<compile_context>
chip_gen: v5e
topology: v5e:2x2
jax: 0.10.0
libtpu: 0.0.40
codegen_flags: <defaults>
</compile_context>

<pallas_src>
import jax
import jax.numpy as jnp
import numpy as np
from jax.experimental import pallas as pl
from jax.experimental.pallas import tpu as pltpu

D = 100          # hidden size fixed by the module (alpha = Linear(6*D, 1))
D2 = 2 * D       # feature dim of H and U
D8 = 8 * D       # feature dim of G


def _attention_flow_compute(w_ref, c_ref, h_ref, u_ref):
    """Shared math for one block of batch rows. Returns f32 values."""
    Hb = h_ref[...]                                   # (Bb, T, 2D) bf16
    Ub = u_ref[...]                                   # (Bb, J, 2D) bf16
    H = Hb.astype(jnp.float32)                        # f32 working copy
    w = w_ref[...]                                    # (2, 2D) f32: [w_h; w_m]
    c = c_ref[...]                                    # (Bb, 1, J) f32: U·w_u+b
    wh, wm = w[0], w[1]

    # Row term H·w_h: VPU multiply + lane reduce (keeps the MXU free).
    a = jnp.sum(H * wh, axis=-1, keepdims=True)                 # (Bb, T, 1)

    # Similarity matrix S -- MXU with bf16 operands, f32 accumulation.
    hm = (H * wm).astype(jnp.bfloat16)
    S = jnp.einsum('btd,bjd->btj', hm, Ub,
                   preferred_element_type=jnp.float32)          # (Bb, T, J)
    S = S + a + c

    # Context-to-query attention: softmax over J (EUP reciprocal), attend U.
    s_max = jnp.max(S, axis=-1, keepdims=True)                  # (Bb, T, 1)
    p = jnp.exp(S - s_max)
    p = p * pl.reciprocal(jnp.sum(p, axis=-1, keepdims=True), approx=True)
    U_t = jnp.einsum('btj,bjd->btd', p.astype(jnp.bfloat16), Ub,
                     preferred_element_type=jnp.float32)        # (Bb, T, 2D)

    # Query-to-context attention: softmax over T of max_j S (s_max reused).
    # Exact divide here -- only T values per row, and downstream may be
    # sensitive to the Q2C weights.
    mm = jnp.max(s_max, axis=1, keepdims=True)                  # (Bb, 1, 1)
    e = jnp.exp(s_max - mm)                                     # (Bb, T, 1)
    q = e / jnp.sum(e, axis=1, keepdims=True)                   # (Bb, T, 1)
    H_t = jnp.sum(q * H, axis=1, keepdims=True)                 # (Bb, 1, 2D)

    return H, U_t, H * U_t, H * H_t, q


def _fused_kernel(w_ref, c_ref, h_ref, u_ref, g_ref, q_ref):
    """Writes the concatenated (Bb, T, 8D) G directly (no extra HBM pass)."""
    H, U_t, HUt, HHt, q = _attention_flow_compute(w_ref, c_ref, h_ref, u_ref)
    G = jnp.concatenate([H, U_t, HUt, HHt], axis=-1)            # (Bb, T, 8D)
    g_ref[...] = G.astype(g_ref.dtype)
    q_ref[...] = q.astype(q_ref.dtype)


def _slab_kernel(w_ref, c_ref, h_ref, u_ref, ut_ref, hut_ref, hht_ref, q_ref):
    """Fallback layout: three lane-aligned 2D slabs; wrapper concats with H."""
    _, U_t, HUt, HHt, q = _attention_flow_compute(w_ref, c_ref, h_ref, u_ref)
    ut_ref[...] = U_t.astype(ut_ref.dtype)
    hut_ref[...] = HUt.astype(hut_ref.dtype)
    hht_ref[...] = HHt.astype(hht_ref.dtype)
    q_ref[...] = q.astype(q_ref.dtype)


def _vmem_limit_bytes():
    """Per-generation scoped-VMEM limit (~3/4 of physical, capped at 96 MiB)."""
    try:
        cap = int(pltpu.get_tpu_info().vmem_capacity_bytes)
    except Exception:
        cap = 64 << 20          # conservative: v7x per-TC VMEM
    return min((cap * 3) // 4, 96 << 20)


def _per_row_vmem_bytes(T, J):
    """VMEM bytes per batch row: double-buffered I/O + in-kernel temporaries."""
    io = (T * D2 * 2          # H (bf16)
          + J * D2 * 2        # U (bf16)
          + J * 4             # c  (f32)
          + T * D8 * 2        # G out (bf16)
          + T * 4)            # q out (f32)
    temps = (T * D2 * 4                       # H upcast to f32
             + T * D2 * 2                     # (H*w_m) bf16 MXU operand
             + 2 * T * J * 4 + T * J * 2      # S, p (f32), p (bf16)
             + T * D2 * 4                     # U_tilde f32
             + 2 * T * D2 * 2                 # H*U~, H*H~ bf16
             + T * D8 * 4 + T * D8 * 2)       # concat staging (f32 + bf16)
    return 2 * io + temps


def _pick_block_b(B, T, J, budget_bytes):
    fit = max(1, budget_bytes // _per_row_vmem_bytes(T, J))
    # Keep >= 4 grid steps when possible: >= 2 per TensorCore on v7x and real
    # double-buffering on single-TC chips (grid of 1 exposes full DMA latency).
    min_steps = min(4, B)
    cap = max(1, B // min_steps)
    return int(max(1, min(B, fit, cap)))


def _build_call(fused, B, T, J, block_b, vmem_limit):
    grid = (pl.cdiv(B, block_b),)
    in_specs = [
        pl.BlockSpec((2, D2), lambda bi: (0, 0)),                # w  (w_h; w_m)
        pl.BlockSpec((block_b, 1, J), lambda bi: (bi, 0, 0)),    # c
        pl.BlockSpec((block_b, T, D2), lambda bi: (bi, 0, 0)),   # H
        pl.BlockSpec((block_b, J, D2), lambda bi: (bi, 0, 0)),   # U
    ]
    q_shape = jax.ShapeDtypeStruct((B, T, 1), jnp.float32)
    q_spec = pl.BlockSpec((block_b, T, 1), lambda bi: (bi, 0, 0))
    if fused:
        out_shape = (jax.ShapeDtypeStruct((B, T, D8), jnp.bfloat16), q_shape)
        out_specs = [pl.BlockSpec((block_b, T, D8), lambda bi: (bi, 0, 0)),
                     q_spec]
        kernel = _fused_kernel
    else:
        slab = jax.ShapeDtypeStruct((B, T, D2), jnp.bfloat16)
        slab_spec = pl.BlockSpec((block_b, T, D2), lambda bi: (bi, 0, 0))
        out_shape = (slab, slab, slab, q_shape)
        out_specs = [slab_spec, slab_spec, slab_spec, q_spec]
        kernel = _slab_kernel
    return pl.pallas_call(
        kernel,
        out_shape=out_shape,
        grid_spec=pltpu.PrefetchScalarGridSpec(
            num_scalar_prefetch=0,
            grid=grid,
            in_specs=in_specs,
            out_specs=out_specs,
        ),
        compiler_params=pltpu.CompilerParams(
            # Batch steps are independent -> shard across v7x's 2 TensorCores
            # (harmless no-op on single-TC v5e/v6e).
            dimension_semantics=("parallel",),
            vmem_limit_bytes=vmem_limit,
        ),
    )


def attention_flow(H, U, w, b, *, block_b=None):
    """H: (B,T,2D), U: (B,J,2D), w: (6D,), b: (1,).
    Returns (G: (B,T,8D) bf16, Q2C_att: (B,1,T) f32)."""
    B, T, _ = H.shape
    J = U.shape[1]

    # HBM I/O in bf16 (ideally the caller already provides bf16); math in f32.
    Hk = H.astype(jnp.bfloat16)
    Uk = U.astype(jnp.bfloat16)
    w = w.astype(jnp.float32)

    wh, wu, wm = w[0 * D2:1 * D2], w[1 * D2:2 * D2], w[2 * D2:3 * D2]
    w_pack = jnp.stack([wh, wm])                                  # (2, 2D)
    # Tiny per-(b, j) column term + bias, computed once in XLA so the kernel
    # receives it already lane-oriented (B, 1, J) -> no in-kernel J transpose.
    c_pre = (jnp.einsum('bjd,d->bj', Uk.astype(jnp.float32), wu)
             + jnp.asarray(b, jnp.float32).reshape(()))[:, None, :]

    vmem_limit = _vmem_limit_bytes()
    if block_b is None:
        block_b = _pick_block_b(B, T, J, vmem_limit - (8 << 20))
    block_b = int(min(block_b, B))

    try:
        # Preferred path: fully fused G output (single HBM pass).
        G, q_col = _build_call(True, B, T, J, block_b, vmem_limit)(
            w_pack, c_pre, Hk, Uk)
        jax.block_until_ready((G, q_col))
    except Exception:
        # Fallback if this Mosaic build rejects the unaligned (200-lane)
        # in-kernel concat: lane-aligned slabs + XLA concat (one extra HBM
        # pass over G, but always lowers).
        ut, hut, hht, q_col = _build_call(False, B, T, J, block_b, vmem_limit)(
            w_pack, c_pre, Hk, Uk)
        G = jnp.concatenate([Hk, ut, hut, hht], axis=-1)

    q2c = jnp.swapaxes(q_col, 1, 2)                               # (B, 1, T)
    return G, q2c


def reference(H, U, w, b):
    """Pure-JAX transcription of the PyTorch forward, for verification."""
    B, T, _ = H.shape
    J = U.shape[1]
    Hi = jnp.repeat(H, J, axis=1)                         # repeat_interleave
    Ur = jnp.tile(U, (1, T, 1))                           # .repeat(1, T, 1)
    HU = jnp.concatenate([Hi, Ur, Hi * Ur], axis=-1)      # (B, T*J, 6D)
    S = (HU @ w + b).reshape(B, T, J)
    P = jax.nn.softmax(S, axis=-1)
    U_tilde = P @ U
    q = jax.nn.softmax(jnp.max(S, axis=-1), axis=-1)[:, None, :]   # (B,1,T)
    H_tilde = jnp.tile(q @ H, (1, T, 1))
    G = jnp.concatenate([H, U_tilde, H * U_tilde, H * H_tilde], axis=-1)
    return G, q


if __name__ == "__main__":
    key = jax.random.PRNGKey(0)
    kH, kU, kW, kB = jax.random.split(key, 4)

    B, T, J = 2, 16, 8
    H = jax.random.normal(kH, (B, T, D2), dtype=jnp.float32)
    U = jax.random.normal(kU, (B, J, D2), dtype=jnp.float32)
    # Deterministic synthetic parameters for alpha = Linear(6*D, 1).
    w = jax.random.normal(kW, (6 * D,), dtype=jnp.float32) * 0.05
    b = jax.random.normal(kB, (1,), dtype=jnp.float32) * 0.05

    # Kernel I/O is bf16; run the reference on the same bf16-rounded inputs so
    # the comparison isolates kernel error (bf16 MXU operands, bf16 G stores,
    # approx reciprocal) from input quantization.
    Hb = H.astype(jnp.bfloat16)
    Ub = U.astype(jnp.bfloat16)

    G, q2c = attention_flow(Hb, Ub, w, b)
    jax.block_until_ready((G, q2c))

    G_ref, q_ref = reference(Hb.astype(jnp.float32), Ub.astype(jnp.float32),
                             w, b[0])
    assert G.shape == (B, T, 8 * D) and q2c.shape == (B, 1, T)
    G_np = np.asarray(G.astype(jnp.float32))
    q_np = np.asarray(q2c.astype(jnp.float32))
    # Tolerances cover bf16 I/O + bf16 MXU operands + approximate reciprocal.
    assert np.allclose(G_np, np.asarray(G_ref), rtol=2e-2, atol=2e-2)
    assert np.allclose(q_np, np.asarray(q_ref), rtol=2e-2, atol=2e-2)
    print("KERNEL_OK")
</pallas_src>

<mosaic_0001>
module attributes {stable_mosaic.version = 11 : i64} {
  func.func @_fused_kernel(%arg0: i32, %arg1: memref<2x200xf32, #tpu.memory_space<vmem>>, %arg2: memref<1x1x8xf32, #tpu.memory_space<vmem>>, %arg3: memref<1x16x200xbf16, #tpu.memory_space<vmem>>, %arg4: memref<1x8x200xbf16, #tpu.memory_space<vmem>>, %arg5: memref<1x16x800xbf16, #tpu.memory_space<vmem>>, %arg6: memref<1x16x1xf32, #tpu.memory_space<vmem>>) attributes {dimension_semantics = [#tpu.dimension_semantics<parallel>], iteration_bounds = array<i64: 2>, scalar_prefetch = 0 : i64, scratch_operands = 0 : i64, tpu.core_type = #tpu.core_type<tc>, window_params = [{pipeline_mode = #tpu.pipeline_mode<synchronous>, transform_indices = @transform_0, window_bounds = array<i64: 2, 200>}, {transform_indices = @transform_1, window_bounds = array<i64: 1, 1, 8>}, {transform_indices = @transform_2, window_bounds = array<i64: 1, 16, 200>}, {transform_indices = @transform_3, window_bounds = array<i64: 1, 8, 200>}, {transform_indices = @transform_4, window_bounds = array<i64: 1, 16, 800>}, {transform_indices = @transform_5, window_bounds = array<i64: 1, 16, 1>}]} {
    %c0 = arith.constant 0 : index
    %c0_0 = arith.constant 0 : index
    %c0_1 = arith.constant 0 : index
    %0 = vector.load %arg3[%c0, %c0_0, %c0_1] : memref<1x16x200xbf16, #tpu.memory_space<vmem>>, vector<1x16x200xbf16>
    %c0_2 = arith.constant 0 : index
    %c0_3 = arith.constant 0 : index
    %c0_4 = arith.constant 0 : index
    %1 = vector.load %arg4[%c0_2, %c0_3, %c0_4] : memref<1x8x200xbf16, #tpu.memory_space<vmem>>, vector<1x8x200xbf16>
    %2 = arith.extf %0 : vector<1x16x200xbf16> to vector<1x16x200xf32>
    %c0_5 = arith.constant 0 : index
    %c0_6 = arith.constant 0 : index
    %3 = vector.load %arg1[%c0_5, %c0_6] : memref<2x200xf32, #tpu.memory_space<vmem>>, vector<2x200xf32>
    %c0_7 = arith.constant 0 : index
    %c0_8 = arith.constant 0 : index
    %c0_9 = arith.constant 0 : index
    %4 = vector.load %arg2[%c0_7, %c0_8, %c0_9] : memref<1x1x8xf32, #tpu.memory_space<vmem>>, vector<1x1x8xf32>
    %5 = vector.extract_strided_slice %3 {offsets = [0, 0], sizes = [1, 200], strides = [1, 1]} : vector<2x200xf32> to vector<1x200xf32>
    %6 = vector.shape_cast %5 : vector<1x200xf32> to vector<200xf32>
    %7 = vector.extract_strided_slice %3 {offsets = [1, 0], sizes = [1, 200], strides = [1, 1]} : vector<2x200xf32> to vector<1x200xf32>
    %8 = vector.shape_cast %7 : vector<1x200xf32> to vector<200xf32>
    %9 = vector.shape_cast %6 : vector<200xf32> to vector<1x1x200xf32>
    %10 = vector.broadcast %9 : vector<1x1x200xf32> to vector<1x16x200xf32>
    %11 = arith.mulf %2, %10 : vector<1x16x200xf32>
    %cst = arith.constant dense<0.000000e+00> : vector<1x16xf32>
    %12 = vector.multi_reduction <add>, %11, %cst [2] : vector<1x16x200xf32> to vector<1x16xf32>
    %13 = vector.shape_cast %12 : vector<1x16xf32> to vector<1x16x1xf32>
    %14 = vector.shape_cast %8 : vector<200xf32> to vector<1x1x200xf32>
    %15 = vector.broadcast %14 : vector<1x1x200xf32> to vector<1x16x200xf32>
    %16 = arith.mulf %2, %15 : vector<1x16x200xf32>
    %17 = arith.truncf %16 : vector<1x16x200xf32> to vector<1x16x200xbf16>
    "tpu.trace_start"() <{level = 10 : i32, message = "btd,bjd->btj"}> : () -> ()
    %cst_10 = arith.constant dense<0.000000e+00> : vector<1x16x8xf32>
    %18 = tpu.matmul %17, %1, %cst_10 {dimension_numbers = #tpu.dot_dimension_numbers<[2], [2], [1], [1], [0, 0, 0, 1, 1, 1], [0], [0]>} : vector<1x16x200xbf16>, vector<1x8x200xbf16>, vector<1x16x8xf32> -> vector<1x16x8xf32>
    "tpu.trace_stop"() : () -> ()
    %19 = vector.broadcast %13 : vector<1x16x1xf32> to vector<1x16x8xf32>
    %20 = arith.addf %18, %19 : vector<1x16x8xf32>
    %21 = vector.broadcast %4 : vector<1x1x8xf32> to vector<1x16x8xf32>
    %22 = arith.addf %20, %21 : vector<1x16x8xf32>
    %cst_11 = arith.constant dense<0xFF800000> : vector<1x16xf32>
    %23 = vector.multi_reduction <maximumf>, %22, %cst_11 [2] : vector<1x16x8xf32> to vector<1x16xf32>
    %24 = vector.shape_cast %23 : vector<1x16xf32> to vector<1x16x1xf32>
    %25 = vector.broadcast %24 : vector<1x16x1xf32> to vector<1x16x8xf32>
    %26 = arith.subf %22, %25 : vector<1x16x8xf32>
    %27 = math.exp %26 : vector<1x16x8xf32>
    %cst_12 = arith.constant dense<0.000000e+00> : vector<1x16xf32>
    %28 = vector.multi_reduction <add>, %27, %cst_12 [2] : vector<1x16x8xf32> to vector<1x16xf32>
    %29 = vector.shape_cast %28 : vector<1x16xf32> to vector<1x16x1xf32>
    %30 = tpu.reciprocal %29 {approx = true} : vector<1x16x1xf32> -> vector<1x16x1xf32>
    %31 = vector.broadcast %30 : vector<1x16x1xf32> to vector<1x16x8xf32>
    %32 = arith.mulf %27, %31 : vector<1x16x8xf32>
    %33 = arith.truncf %32 : vector<1x16x8xf32> to vector<1x16x8xbf16>
    "tpu.trace_start"() <{level = 10 : i32, message = "btj,bjd->btd"}> : () -> ()
    %cst_13 = arith.constant dense<0.000000e+00> : vector<1x16x200xf32>
    %34 = tpu.matmul %33, %1, %cst_13 {dimension_numbers = #tpu.dot_dimension_numbers<[2], [1], [1], [2], [0, 0, 0, 1, 1, 2], [0], [0]>} : vector<1x16x8xbf16>, vector<1x8x200xbf16>, vector<1x16x200xf32> -> vector<1x16x200xf32>
    "tpu.trace_stop"() : () -> ()
    %cst_14 = arith.constant dense<0xFF800000> : vector<1x1xf32>
    %35 = vector.multi_reduction <maximumf>, %24, %cst_14 [1] : vector<1x16x1xf32> to vector<1x1xf32>
    %36 = vector.shape_cast %35 : vector<1x1xf32> to vector<1x1x1xf32>
    %37 = vector.broadcast %36 : vector<1x1x1xf32> to vector<1x16x1xf32>
    %38 = arith.subf %24, %37 : vector<1x16x1xf32>
    %39 = math.exp %38 : vector<1x16x1xf32>
    %cst_15 = arith.constant dense<0.000000e+00> : vector<1x1xf32>
    %40 = vector.multi_reduction <add>, %39, %cst_15 [1] : vector<1x16x1xf32> to vector<1x1xf32>
    %41 = vector.shape_cast %40 : vector<1x1xf32> to vector<1x1x1xf32>
    %42 = vector.broadcast %41 : vector<1x1x1xf32> to vector<1x16x1xf32>
    %43 = arith.divf %39, %42 : vector<1x16x1xf32>
    %44 = vector.broadcast %43 : vector<1x16x1xf32> to vector<1x16x200xf32>
    %45 = arith.mulf %44, %2 : vector<1x16x200xf32>
    %cst_16 = arith.constant dense<0.000000e+00> : vector<1x200xf32>
    %46 = vector.multi_reduction <add>, %45, %cst_16 [1] : vector<1x16x200xf32> to vector<1x200xf32>
    %47 = vector.shape_cast %46 : vector<1x200xf32> to vector<1x1x200xf32>
    %48 = arith.mulf %2, %34 : vector<1x16x200xf32>
    %49 = vector.broadcast %47 : vector<1x1x200xf32> to vector<1x16x200xf32>
    %50 = arith.mulf %2, %49 : vector<1x16x200xf32>
    %51 = tpu.concatenate %2, %34, %48, %50 in 2 : vector<1x16x200xf32>, vector<1x16x200xf32>, vector<1x16x200xf32>, vector<1x16x200xf32> -> vector<1x16x800xf32>
    %52 = arith.truncf %51 : vector<1x16x800xf32> to vector<1x16x800xbf16>
    %c0_17 = arith.constant 0 : index
    %c0_18 = arith.constant 0 : index
    %c0_19 = arith.constant 0 : index
    %53 = vector.load %arg5[%c0_17, %c0_18, %c0_19] : memref<1x16x800xbf16, #tpu.memory_space<vmem>>, vector<1x16x800xbf16>
    tpu.vector_store %arg5[%c0_17, %c0_18, %c0_19], %52 {strides = array<i32>} : memref<1x16x800xbf16, #tpu.memory_space<vmem>>, vector<1x16x800xbf16>,
    %c0_20 = arith.constant 0 : index
    %c0_21 = arith.constant 0 : index
    %c0_22 = arith.constant 0 : index
    %54 = vector.load %arg6[%c0_20, %c0_21, %c0_22] : memref<1x16x1xf32, #tpu.memory_space<vmem>>, vector<1x16x1xf32>
    tpu.vector_store %arg6[%c0_20, %c0_21, %c0_22], %43 {strides = array<i32>} : memref<1x16x1xf32, #tpu.memory_space<vmem>>, vector<1x16x1xf32>,
    return
  }
  func.func @transform_0(%arg0: i32) -> (i32, i32) {
    %c0_i32 = arith.constant 0 : i32
    %c0_i32_0 = arith.constant 0 : i32
    %c0_i32_1 = arith.constant 0 : i32
    return %c0_i32, %c0_i32_0 : i32, i32
  }
  func.func @transform_1(%arg0: i32) -> (i32, i32, i32) {
    %c0_i32 = arith.constant 0 : i32
    %c0_i32_0 = arith.constant 0 : i32
    %c0_i32_1 = arith.constant 0 : i32
    return %arg0, %c0_i32, %c0_i32_0 : i32, i32, i32
  }
  func.func @transform_2(%arg0: i32) -> (i32, i32, i32) {
    %c0_i32 = arith.constant 0 : i32
    %c0_i32_0 = arith.constant 0 : i32
    %c0_i32_1 = arith.constant 0 : i32
    return %arg0, %c0_i32, %c0_i32_0 : i32, i32, i32
  }
  func.func @transform_3(%arg0: i32) -> (i32, i32, i32) {
    %c0_i32 = arith.constant 0 : i32
    %c0_i32_0 = arith.constant 0 : i32
    %c0_i32_1 = arith.constant 0 : i32
    return %arg0, %c0_i32, %c0_i32_0 : i32, i32, i32
  }
  func.func @transform_4(%arg0: i32) -> (i32, i32, i32) {
    %c0_i32 = arith.constant 0 : i32
    %c0_i32_0 = arith.constant 0 : i32
    %c0_i32_1 = arith.constant 0 : i32
    return %arg0, %c0_i32, %c0_i32_0 : i32, i32, i32
  }
  func.func @transform_5(%arg0: i32) -> (i32, i32, i32) {
    %c0_i32 = arith.constant 0 : i32
    %c0_i32_0 = arith.constant 0 : i32
    %c0_i32_1 = arith.constant 0 : i32
    return %arg0, %c0_i32, %c0_i32_0 : i32, i32, i32
  }
}

module attributes {stable_mosaic.version = 11 : i64} {
  func.func @_slab_kernel(%arg0: i32, %arg1: memref<2x200xf32, #tpu.memory_space<vmem>>, %arg2: memref<1x1x8xf32, #tpu.memory_space<vmem>>, %arg3: memref<1x16x200xbf16, #tpu.memory_space<vmem>>, %arg4: memref<1x8x200xbf16, #tpu.memory_space<vmem>>, %arg5: memref<1x16x200xbf16, #tpu.memory_space<vmem>>, %arg6: memref<1x16x200xbf16, #tpu.memory_space<vmem>>, %arg7: memref<1x16x200xbf16, #tpu.memory_space<vmem>>, %arg8: memref<1x16x1xf32, #tpu.memory_space<vmem>>) attributes {dimension_semantics = [#tpu.dimension_semantics<parallel>], iteration_bounds = array<i64: 2>, scalar_prefetch = 0 : i64, scratch_operands = 0 : i64, tpu.core_type = #tpu.core_type<tc>, window_params = [{pipeline_mode = #tpu.pipeline_mode<synchronous>, transform_indices = @transform_0, window_bounds = array<i64: 2, 200>}, {transform_indices = @transform_1, window_bounds = array<i64: 1, 1, 8>}, {transform_indices = @transform_2, window_bounds = array<i64: 1, 16, 200>}, {transform_indices = @transform_3, window_bounds = array<i64: 1, 8, 200>}, {transform_indices = @transform_4, window_bounds = array<i64: 1, 16, 200>}, {transform_indices = @transform_5, window_bounds = array<i64: 1, 16, 200>}, {transform_indices = @transform_6, window_bounds = array<i64: 1, 16, 200>}, {transform_indices = @transform_7, window_bounds = array<i64: 1, 16, 1>}]} {
    %c0 = arith.constant 0 : index
    %c0_0 = arith.constant 0 : index
    %c0_1 = arith.constant 0 : index
    %0 = vector.load %arg3[%c0, %c0_0, %c0_1] : memref<1x16x200xbf16, #tpu.memory_space<vmem>>, vector<1x16x200xbf16>
    %c0_2 = arith.constant 0 : index
    %c0_3 = arith.constant 0 : index
    %c0_4 = arith.constant 0 : index
    %1 = vector.load %arg4[%c0_2, %c0_3, %c0_4] : memref<1x8x200xbf16, #tpu.memory_space<vmem>>, vector<1x8x200xbf16>
    %2 = arith.extf %0 : vector<1x16x200xbf16> to vector<1x16x200xf32>
    %c0_5 = arith.constant 0 : index
    %c0_6 = arith.constant 0 : index
    %3 = vector.load %arg1[%c0_5, %c0_6] : memref<2x200xf32, #tpu.memory_space<vmem>>, vector<2x200xf32>
    %c0_7 = arith.constant 0 : index
    %c0_8 = arith.constant 0 : index
    %c0_9 = arith.constant 0 : index
    %4 = vector.load %arg2[%c0_7, %c0_8, %c0_9] : memref<1x1x8xf32, #tpu.memory_space<vmem>>, vector<1x1x8xf32>
    %5 = vector.extract_strided_slice %3 {offsets = [0, 0], sizes = [1, 200], strides = [1, 1]} : vector<2x200xf32> to vector<1x200xf32>
    %6 = vector.shape_cast %5 : vector<1x200xf32> to vector<200xf32>
    %7 = vector.extract_strided_slice %3 {offsets = [1, 0], sizes = [1, 200], strides = [1, 1]} : vector<2x200xf32> to vector<1x200xf32>
    %8 = vector.shape_cast %7 : vector<1x200xf32> to vector<200xf32>
    %9 = vector.shape_cast %6 : vector<200xf32> to vector<1x1x200xf32>
    %10 = vector.broadcast %9 : vector<1x1x200xf32> to vector<1x16x200xf32>
    %11 = arith.mulf %2, %10 : vector<1x16x200xf32>
    %cst = arith.constant dense<0.000000e+00> : vector<1x16xf32>
    %12 = vector.multi_reduction <add>, %11, %cst [2] : vector<1x16x200xf32> to vector<1x16xf32>
    %13 = vector.shape_cast %12 : vector<1x16xf32> to vector<1x16x1xf32>
    %14 = vector.shape_cast %8 : vector<200xf32> to vector<1x1x200xf32>
    %15 = vector.broadcast %14 : vector<1x1x200xf32> to vector<1x16x200xf32>
    %16 = arith.mulf %2, %15 : vector<1x16x200xf32>
    %17 = arith.truncf %16 : vector<1x16x200xf32> to vector<1x16x200xbf16>
    "tpu.trace_start"() <{level = 10 : i32, message = "btd,bjd->btj"}> : () -> ()
    %cst_10 = arith.constant dense<0.000000e+00> : vector<1x16x8xf32>
    %18 = tpu.matmul %17, %1, %cst_10 {dimension_numbers = #tpu.dot_dimension_numbers<[2], [2], [1], [1], [0, 0, 0, 1, 1, 1], [0], [0]>} : vector<1x16x200xbf16>, vector<1x8x200xbf16>, vector<1x16x8xf32> -> vector<1x16x8xf32>
    "tpu.trace_stop"() : () -> ()
    %19 = vector.broadcast %13 : vector<1x16x1xf32> to vector<1x16x8xf32>
    %20 = arith.addf %18, %19 : vector<1x16x8xf32>
    %21 = vector.broadcast %4 : vector<1x1x8xf32> to vector<1x16x8xf32>
    %22 = arith.addf %20, %21 : vector<1x16x8xf32>
    %cst_11 = arith.constant dense<0xFF800000> : vector<1x16xf32>
    %23 = vector.multi_reduction <maximumf>, %22, %cst_11 [2] : vector<1x16x8xf32> to vector<1x16xf32>
    %24 = vector.shape_cast %23 : vector<1x16xf32> to vector<1x16x1xf32>
    %25 = vector.broadcast %24 : vector<1x16x1xf32> to vector<1x16x8xf32>
    %26 = arith.subf %22, %25 : vector<1x16x8xf32>
    %27 = math.exp %26 : vector<1x16x8xf32>
    %cst_12 = arith.constant dense<0.000000e+00> : vector<1x16xf32>
    %28 = vector.multi_reduction <add>, %27, %cst_12 [2] : vector<1x16x8xf32> to vector<1x16xf32>
    %29 = vector.shape_cast %28 : vector<1x16xf32> to vector<1x16x1xf32>
    %30 = tpu.reciprocal %29 {approx = true} : vector<1x16x1xf32> -> vector<1x16x1xf32>
    %31 = vector.broadcast %30 : vector<1x16x1xf32> to vector<1x16x8xf32>
    %32 = arith.mulf %27, %31 : vector<1x16x8xf32>
    %33 = arith.truncf %32 : vector<1x16x8xf32> to vector<1x16x8xbf16>
    "tpu.trace_start"() <{level = 10 : i32, message = "btj,bjd->btd"}> : () -> ()
    %cst_13 = arith.constant dense<0.000000e+00> : vector<1x16x200xf32>
    %34 = tpu.matmul %33, %1, %cst_13 {dimension_numbers = #tpu.dot_dimension_numbers<[2], [1], [1], [2], [0, 0, 0, 1, 1, 2], [0], [0]>} : vector<1x16x8xbf16>, vector<1x8x200xbf16>, vector<1x16x200xf32> -> vector<1x16x200xf32>
    "tpu.trace_stop"() : () -> ()
    %cst_14 = arith.constant dense<0xFF800000> : vector<1x1xf32>
    %35 = vector.multi_reduction <maximumf>, %24, %cst_14 [1] : vector<1x16x1xf32> to vector<1x1xf32>
    %36 = vector.shape_cast %35 : vector<1x1xf32> to vector<1x1x1xf32>
    %37 = vector.broadcast %36 : vector<1x1x1xf32> to vector<1x16x1xf32>
    %38 = arith.subf %24, %37 : vector<1x16x1xf32>
    %39 = math.exp %38 : vector<1x16x1xf32>
    %cst_15 = arith.constant dense<0.000000e+00> : vector<1x1xf32>
    %40 = vector.multi_reduction <add>, %39, %cst_15 [1] : vector<1x16x1xf32> to vector<1x1xf32>
    %41 = vector.shape_cast %40 : vector<1x1xf32> to vector<1x1x1xf32>
    %42 = vector.broadcast %41 : vector<1x1x1xf32> to vector<1x16x1xf32>
    %43 = arith.divf %39, %42 : vector<1x16x1xf32>
    %44 = vector.broadcast %43 : vector<1x16x1xf32> to vector<1x16x200xf32>
    %45 = arith.mulf %44, %2 : vector<1x16x200xf32>
    %cst_16 = arith.constant dense<0.000000e+00> : vector<1x200xf32>
    %46 = vector.multi_reduction <add>, %45, %cst_16 [1] : vector<1x16x200xf32> to vector<1x200xf32>
    %47 = vector.shape_cast %46 : vector<1x200xf32> to vector<1x1x200xf32>
    %48 = arith.mulf %2, %34 : vector<1x16x200xf32>
    %49 = vector.broadcast %47 : vector<1x1x200xf32> to vector<1x16x200xf32>
    %50 = arith.mulf %2, %49 : vector<1x16x200xf32>
    %51 = arith.truncf %34 : vector<1x16x200xf32> to vector<1x16x200xbf16>
    %c0_17 = arith.constant 0 : index
    %c0_18 = arith.constant 0 : index
    %c0_19 = arith.constant 0 : index
    %52 = vector.load %arg5[%c0_17, %c0_18, %c0_19] : memref<1x16x200xbf16, #tpu.memory_space<vmem>>, vector<1x16x200xbf16>
    tpu.vector_store %arg5[%c0_17, %c0_18, %c0_19], %51 {strides = array<i32>} : memref<1x16x200xbf16, #tpu.memory_space<vmem>>, vector<1x16x200xbf16>,
    %53 = arith.truncf %48 : vector<1x16x200xf32> to vector<1x16x200xbf16>
    %c0_20 = arith.constant 0 : index
    %c0_21 = arith.constant 0 : index
    %c0_22 = arith.constant 0 : index
    %54 = vector.load %arg6[%c0_20, %c0_21, %c0_22] : memref<1x16x200xbf16, #tpu.memory_space<vmem>>, vector<1x16x200xbf16>
    tpu.vector_store %arg6[%c0_20, %c0_21, %c0_22], %53 {strides = array<i32>} : memref<1x16x200xbf16, #tpu.memory_space<vmem>>, vector<1x16x200xbf16>,
    %55 = arith.truncf %50 : vector<1x16x200xf32> to vector<1x16x200xbf16>
    %c0_23 = arith.constant 0 : index
    %c0_24 = arith.constant 0 : index
    %c0_25 = arith.constant 0 : index
    %56 = vector.load %arg7[%c0_23, %c0_24, %c0_25] : memref<1x16x200xbf16, #tpu.memory_space<vmem>>, vector<1x16x200xbf16>
    tpu.vector_store %arg7[%c0_23, %c0_24, %c0_25], %55 {strides = array<i32>} : memref<1x16x200xbf16, #tpu.memory_space<vmem>>, vector<1x16x200xbf16>,
    %c0_26 = arith.constant 0 : index
    %c0_27 = arith.constant 0 : index
    %c0_28 = arith.constant 0 : index
    %57 = vector.load %arg8[%c0_26, %c0_27, %c0_28] : memref<1x16x1xf32, #tpu.memory_space<vmem>>, vector<1x16x1xf32>
    tpu.vector_store %arg8[%c0_26, %c0_27, %c0_28], %43 {strides = array<i32>} : memref<1x16x1xf32, #tpu.memory_space<vmem>>, vector<1x16x1xf32>,
    return
  }
  func.func @transform_0(%arg0: i32) -> (i32, i32) {
    %c0_i32 = arith.constant 0 : i32
    %c0_i32_0 = arith.constant 0 : i32
    %c0_i32_1 = arith.constant 0 : i32
    return %c0_i32, %c0_i32_0 : i32, i32
  }
  func.func @transform_1(%arg0: i32) -> (i32, i32, i32) {
    %c0_i32 = arith.constant 0 : i32
    %c0_i32_0 = arith.constant 0 : i32
    %c0_i32_1 = arith.constant 0 : i32
    return %arg0, %c0_i32, %c0_i32_0 : i32, i32, i32
  }
  func.func @transform_2(%arg0: i32) -> (i32, i32, i32) {
    %c0_i32 = arith.constant 0 : i32
    %c0_i32_0 = arith.constant 0 : i32
    %c0_i32_1 = arith.constant 0 : i32
    return %arg0, %c0_i32, %c0_i32_0 : i32, i32, i32
  }
  func.func @transform_3(%arg0: i32) -> (i32, i32, i32) {
    %c0_i32 = arith.constant 0 : i32
    %c0_i32_0 = arith.constant 0 : i32
    %c0_i32_1 = arith.constant 0 : i32
    return %arg0, %c0_i32, %c0_i32_0 : i32, i32, i32
  }
  func.func @transform_4(%arg0: i32) -> (i32, i32, i32) {
    %c0_i32 = arith.constant 0 : i32
    %c0_i32_0 = arith.constant 0 : i32
    %c0_i32_1 = arith.constant 0 : i32
    return %arg0, %c0_i32, %c0_i32_0 : i32, i32, i32
  }
  func.func @transform_5(%arg0: i32) -> (i32, i32, i32) {
    %c0_i32 = arith.constant 0 : i32
    %c0_i32_0 = arith.constant 0 : i32
    %c0_i32_1 = arith.constant 0 : i32
    return %arg0, %c0_i32, %c0_i32_0 : i32, i32, i32
  }
  func.func @transform_6(%arg0: i32) -> (i32, i32, i32) {
    %c0_i32 = arith.constant 0 : i32
    %c0_i32_0 = arith.constant 0 : i32
    %c0_i32_1 = arith.constant 0 : i32
    return %arg0, %c0_i32, %c0_i32_0 : i32, i32, i32
  }
  func.func @transform_7(%arg0: i32) -> (i32, i32, i32) {
    %c0_i32 = arith.constant 0 : i32
    %c0_i32_0 = arith.constant 0 : i32
    %c0_i32_1 = arith.constant 0 : i32
    return %arg0, %c0_i32, %c0_i32_0 : i32, i32, i32
  }
}

</mosaic_0001>

<llo_original>
// kernel: tpu_custom_call.1
$region0: #{tpu_custom_call.1}
  #allocation0 [shape = 'u32[]', space=smem, size = 0x4, offset = 0x4, fixed_abs, tag = 'smem constant byte address 0x4 - core index']
  #allocation1 [shape = 'u32[72,128]{1,0:T(1,128)}', space=vmem, size = 0x9000, scoped, tag = 'internal scratch']
  %s0 = inlined_call_operand.hbm [shape: f32[2,200], index: 0, kind: input, shape index: {}]
  %s1 = inlined_call_operand.hbm [shape: f32[2,1,8], index: 1, kind: input, shape index: {}]
  %s2 = inlined_call_operand.hbm [shape: bf16[2,16,200], index: 2, kind: input, shape index: {}]
  %s3 = inlined_call_operand.hbm [shape: bf16[2,8,200], index: 3, kind: input, shape index: {}]
  %s4 = inlined_call_operand.hbm [shape: bf16[2,16,800], index: 4, kind: output, shape index: {0}]
  %s5 = inlined_call_operand.vmem [shape: f32[2,16,1], index: 5, kind: output, shape index: {1}]
  %6 = xla_tuple %s4, %s5
  %s7 = sld [smem:[#allocation0]]
  $region73: #{tpu_custom_call.1} parent=0
    _
  %s9 = ssub.s32 1, %s7
  %s10 = scalar_select 0, %s9, %s7
  $region1: #{tpu_custom_call.1} parent=0
    #allocation2 [shape = 'u8[2048]{0}', space=vmem, size = 0x800, scoped, tag = 'input window, operand 0, single buffered']
    #allocation3 [shape = 's32[2]{0}', space=sflag, size = 0x8, scoped, tag = 'scoped memory for tpu_custom_call.1']
    #allocation4 [shape = 's32[2]{0}', space=sflag, size = 0x8, scoped, tag = 'scoped memory for tpu_custom_call.1']
    #allocation5 [shape = 'u8[1024]{0}', space=vmem, size = 0x400, scoped, tag = 'input window, operand 1']
    #allocation6 [shape = 's32[2]{0}', space=sflag, size = 0x8, scoped, tag = 'scoped memory for tpu_custom_call.1']
    #allocation7 [shape = 'u8[16384]{0}', space=vmem, size = 0x4000, scoped, tag = 'input window, operand 2']
    #allocation8 [shape = 'u8[8192]{0}', space=vmem, size = 0x2000, scoped, tag = 'input window, operand 3']
    #allocation9 [shape = 's32[2]{0}', space=sflag, size = 0x8, scoped, tag = 'scoped memory for tpu_custom_call.1']
    #allocation10 [shape = 'u8[57344]{0}', space=vmem, size = 0xe000, scoped, tag = 'output window, operand 0']
    %11 = vsyncpa [#allocation3], 0
    %12 = vsyncpa [#allocation6], 0
    %s13 = scalar_lea.sflag [#allocation6], 1
    %14 = vsyncpa %s13, 0
    %15 = vsyncpa [#allocation9], 0
    %s16 = scalar_lea.sflag [#allocation9], 1
    %17 = vsyncpa %s16, 0
    %18 = vsyncpa [#allocation4], 0
    %s19 = scalar_lea.sflag [#allocation4], 1
    %20 = vsyncpa %s19, 0
    loop: start=0, step=1, limit=4
    $region2: #{tpu_custom_call.1} parent=1 // loop_pre_header
      _
    $region3: #{tpu_custom_call.1} parent=1 // loop_header
      %s22 = sphi 0, %s26
      %p23 = scmp.ge.s32.totalorder %s22, 4
      %s30 = sphi 0, %s30
      %s32 = sphi 0, %s30
      %s33 = sphi 0, %s32
      %s47 = sphi 0, %s33
      %s53 = sphi 0, %s55
      %s56 = sphi 0, %s53
      %s57 = sphi 0, %s56
      %s73 = sphi 0, %s57
      %s79 = sphi 0, %s81
      %s82 = sphi 0, %s79
      %s83 = sphi 0, %s82
      %s99 = sphi 0, %s83
      %s105 = sphi 0, %s107
      %s108 = sphi 0, %s105
      %s109 = sphi 0, %s108
      %s125 = sphi 0, %s109
      %s131 = sphi 0, %s133
      %s134 = sphi 0, %s131
      %s135 = sphi 0, %s134
      %s151 = sphi 0, %s135
      %s157 = sphi 0, %s159
      %s160 = sphi 0, %s157
      %s161 = sphi 0, %s160
      %s177 = sphi 0, %s161
    $region4: #{tpu_custom_call.1} parent=1 // loop_header_branch
      %25 = sbr.rel (%p23) target = $region8
    $region5: #{tpu_custom_call.1} parent=1 // loop_body
      %s27 = ssub.s32 %s22, 1
      %s28 = ssub.s32 %s22, 2
      %s29 = sadd.s32 %s22, 1
      %s31 = sadd.s32 %s30, 1
      %p34 = scmp.eq.s32.totalorder %s22, 1
      %p35 = scmp.ne.s32.totalorder %s30, %s32
      %p36 = scmp.eq.s32.totalorder %s22, 0
      %p37 = por %p35, %p36
      %p38 = scmp.ne.s32.totalorder %s30, %s32
      %p39 = scmp.eq.s32.totalorder %s27, 1
      %p40 = por %p38, %p39
      %p41 = scmp.ne.s32.totalorder %s32, %s33
      %p42 = scmp.eq.s32.totalorder %s27, 0
      %p43 = por %p41, %p42
      %p44 = scmp.ne.s32.totalorder %s32, %s33
      %p45 = scmp.eq.s32.totalorder %s28, 1
      %p46 = por %p44, %p45
      %p48 = scmp.ne.s32.totalorder %s33, %s47
      %p49 = scmp.eq.s32.totalorder %s28, 0
      %p50 = por %p48, %p49
      %s51 = ssub.s32 %s22, %s29
      %p52 = scmp.eq.s32.totalorder %s51, 0
      %s54 = sadd.s32 %s53, 1
      %s55 = scalar_select %p52, %s53, %s54
      %p58 = pneg %p52
      %p59 = scmp.eq.s32.totalorder %s22, 1
      %p60 = por %p58, %p59
      %p61 = scmp.ne.s32.totalorder %s53, %s56
      %p62 = scmp.eq.s32.totalorder %s22, 0
      %p63 = por %p61, %p62
      %p64 = scmp.ne.s32.totalorder %s53, %s56
      %p65 = scmp.eq.s32.totalorder %s27, 1
      %p66 = por %p64, %p65
      %p67 = scmp.ne.s32.totalorder %s56, %s57
      %p68 = scmp.eq.s32.totalorder %s27, 0
      %p69 = por %p67, %p68
      %p70 = scmp.ne.s32.totalorder %s56, %s57
      %p71 = scmp.eq.s32.totalorder %s28, 1
      %p72 = por %p70, %p71
      %p74 = scmp.ne.s32.totalorder %s57, %s73
      %p75 = scmp.eq.s32.totalorder %s28, 0
      %p76 = por %p74, %p75
      %s77 = ssub.s32 %s22, %s29
      %p78 = scmp.eq.s32.totalorder %s77, 0
      %s80 = sadd.s32 %s79, 1
      %s81 = scalar_select %p78, %s79, %s80
      %p84 = pneg %p78
      %p85 = scmp.eq.s32.totalorder %s22, 1
      %p86 = por %p84, %p85
      %p87 = scmp.ne.s32.totalorder %s79, %s82
      %p88 = scmp.eq.s32.totalorder %s22, 0
      %p89 = por %p87, %p88
      %p90 = scmp.ne.s32.totalorder %s79, %s82
      %p91 = scmp.eq.s32.totalorder %s27, 1
      %p92 = por %p90, %p91
      %p93 = scmp.ne.s32.totalorder %s82, %s83
      %p94 = scmp.eq.s32.totalorder %s27, 0
      %p95 = por %p93, %p94
      %p96 = scmp.ne.s32.totalorder %s82, %s83
      %p97 = scmp.eq.s32.totalorder %s28, 1
      %p98 = por %p96, %p97
      %p100 = scmp.ne.s32.totalorder %s83, %s99
      %p101 = scmp.eq.s32.totalorder %s28, 0
      %p102 = por %p100, %p101
      %s103 = ssub.s32 %s22, %s29
      %p104 = scmp.eq.s32.totalorder %s103, 0
      %s106 = sadd.s32 %s105, 1
      %s107 = scalar_select %p104, %s105, %s106
      %p110 = pneg %p104
      %p111 = scmp.eq.s32.totalorder %s22, 1
      %p112 = por %p110, %p111
      %p113 = scmp.ne.s32.totalorder %s105, %s108
      %p114 = scmp.eq.s32.totalorder %s22, 0
      %p115 = por %p113, %p114
      %p116 = scmp.ne.s32.totalorder %s105, %s108
      %p117 = scmp.eq.s32.totalorder %s27, 1
      %p118 = por %p116, %p117
      %p119 = scmp.ne.s32.totalorder %s108, %s109
      %p120 = scmp.eq.s32.totalorder %s27, 0
      %p121 = por %p119, %p120
      %p122 = scmp.ne.s32.totalorder %s108, %s109
      %p123 = scmp.eq.s32.totalorder %s28, 1
      %p124 = por %p122, %p123
      %p126 = scmp.ne.s32.totalorder %s109, %s125
      %p127 = scmp.eq.s32.totalorder %s28, 0
      %p128 = por %p126, %p127
      %s129 = ssub.s32 %s22, %s29
      %p130 = scmp.eq.s32.totalorder %s129, 0
      %s132 = sadd.s32 %s131, 1
      %s133 = scalar_select %p130, %s131, %s132
      %p136 = pneg %p130
      %p137 = scmp.eq.s32.totalorder %s22, 1
      %p138 = por %p136, %p137
      %p139 = scmp.ne.s32.totalorder %s131, %s134
      %p140 = scmp.eq.s32.totalorder %s22, 0
      %p141 = por %p139, %p140
      %p142 = scmp.ne.s32.totalorder %s131, %s134
      %p143 = scmp.eq.s32.totalorder %s27, 1
      %p144 = por %p142, %p143
      %p145 = scmp.ne.s32.totalorder %s134, %s135
      %p146 = scmp.eq.s32.totalorder %s27, 0
      %p147 = por %p145, %p146
      %p148 = scmp.ne.s32.totalorder %s134, %s135
      %p149 = scmp.eq.s32.totalorder %s28, 1
      %p150 = por %p148, %p149
      %p152 = scmp.ne.s32.totalorder %s135, %s151
      %p153 = scmp.eq.s32.totalorder %s28, 0
      %p154 = por %p152, %p153
      %s155 = ssub.s32 %s22, %s29
      %p156 = scmp.eq.s32.totalorder %s155, 0
      %s158 = sadd.s32 %s157, 1
      %s159 = scalar_select %p156, %s157, %s158
      %p162 = pneg %p156
      %p163 = scmp.eq.s32.totalorder %s22, 1
      %p164 = por %p162, %p163
      %p165 = scmp.ne.s32.totalorder %s157, %s160
      %p166 = scmp.eq.s32.totalorder %s22, 0
      %p167 = por %p165, %p166
      %p168 = scmp.ne.s32.totalorder %s157, %s160
      %p169 = scmp.eq.s32.totalorder %s27, 1
      %p170 = por %p168, %p169
      %p171 = scmp.ne.s32.totalorder %s160, %s161
      %p172 = scmp.eq.s32.totalorder %s27, 0
      %p173 = por %p171, %p172
      %p174 = scmp.ne.s32.totalorder %s160, %s161
      %p175 = scmp.eq.s32.totalorder %s28, 1
      %p176 = por %p174, %p175
      %p178 = scmp.ne.s32.totalorder %s161, %s177
      %p179 = scmp.eq.s32.totalorder %s28, 0
      %p180 = por %p178, %p179
      %p181 = scmp.le.s32.totalorder 1, %s22
      %p182 = scmp.lt.s32.totalorder %s22, 3
      %p183 = pnand %p181, %p182
      %p184 = pneg %p183
      // Predicated region
      $region9: #{tpu_custom_call.1} parent=5 // pred_check
        _
      $region10: #{tpu_custom_call.1} parent=5 // pred_check_branch
        %186 = sbr.rel (%p183) target = $region12
      $region11: #{tpu_custom_call.1} parent=5 // pred_region
        %s187 = ssub.s32 %s22, 1
        // Predicated region
        $region13: #{tpu_custom_call.1} parent=11 // pred_check
          %p188 = pneg %p43
        $region14: #{tpu_custom_call.1} parent=11 // pred_check_branch
          %190 = sbr.rel (%p188) target = $region16
        $region15: #{tpu_custom_call.1} parent=11 // pred_region
          %192 = vsyncadd [#allocation3], 0
          %s194 = sshll.u32 %s0, 4
          %s195 = int_to_ptr.hbm [resolvable:$true] %s194
          %s196 = sshll.u32 [#allocation2], 4
          %s197 = int_to_ptr.vmem [resolvable:$true] %s196
          %199 = dma.hbm_to_vmem [thread:$0]  %s195, 64, %s197, [#allocation3]
        $region16: #{tpu_custom_call.1} parent=11 // pred_fallthru
          _
      $region12: #{tpu_custom_call.1} parent=5 // pred_fallthru
        _
      %p200 = scmp.lt.s32.totalorder %s22, 2
      // Predicated region
      $region17: #{tpu_custom_call.1} parent=5 // pred_check
        %p201 = pneg %p200
      $region18: #{tpu_custom_call.1} parent=5 // pred_check_branch
        %203 = sbr.rel (%p201) target = $region20
      $region19: #{tpu_custom_call.1} parent=5 // pred_region
        // Predicated region
        $region21: #{tpu_custom_call.1} parent=19 // pred_check
          %p204 = pneg %p63
        $region22: #{tpu_custom_call.1} parent=19 // pred_check_branch
          %206 = sbr.rel (%p204) target = $region24
        $region23: #{tpu_custom_call.1} parent=19 // pred_region
          %s207 = sand.u32 %s22, 1
          %s208 = scalar_lea.sflag [#allocation6], %s207
          %s209 = sand.u32 %s53, 1
          %s210 = scalar_lea.vmem [#allocation5], %s209
          %212 = vsyncadd %s208, 0
          %s213 = scalar_lea.hbm %s1, %s22
          %s215 = sshll.u32 %s213, 4
          %s216 = int_to_ptr.hbm [resolvable:$true] %s215
          %s217 = sshll.u32 %s210, 4
          %s218 = int_to_ptr.vmem [resolvable:$true] %s217
          %220 = dma.hbm_to_vmem [thread:$0]  %s216, 16, %s218, %s208
        $region24: #{tpu_custom_call.1} parent=19 // pred_fallthru
          _
        // Predicated region
        $region25: #{tpu_custom_call.1} parent=19 // pred_check
          %p221 = pneg %p89
        $region26: #{tpu_custom_call.1} parent=19 // pred_check_branch
          %223 = sbr.rel (%p221) target = $region28
        $region27: #{tpu_custom_call.1} parent=19 // pred_region
          %s224 = sand.u32 %s22, 1
          %s225 = scalar_lea.sflag [#allocation6], %s224
          %s226 = sand.u32 %s79, 1
          %s227 = smul.addr %s226, 16
          %s228 = scalar_lea.vmem [#allocation7], %s227
          %230 = vsyncadd %s225, 0
          %s231 = smul.addr %s22, 4
          %s232 = smul.addr %s231, 4
          %s233 = scalar_lea.hbm %s2, %s232
          %s234 = sshll.u32 %s233, 4
          %s235 = int_to_ptr.hbm [resolvable:$true] %s234
          %s236 = sshll.u32 %s228, 4
          %s237 = int_to_ptr.vmem [resolvable:$true] %s236
          %242 = dma.hbm_to_vmem [thread:$0]  %s235, 256, %s237, %s225, 128, 128, 8
        $region28: #{tpu_custom_call.1} parent=19 // pred_fallthru
          _
        // Predicated region
        $region29: #{tpu_custom_call.1} parent=19 // pred_check
          %p243 = pneg %p115
        $region30: #{tpu_custom_call.1} parent=19 // pred_check_branch
          %245 = sbr.rel (%p243) target = $region32
        $region31: #{tpu_custom_call.1} parent=19 // pred_region
          %s246 = sand.u32 %s105, 1
          %s247 = scalar_lea.sflag [#allocation9], %s246
          %s248 = sand.u32 %s105, 1
          %s249 = smul.addr %s248, 8
          %s250 = scalar_lea.vmem [#allocation8], %s249
          %252 = vsyncadd %s247, 0
          %s253 = smul.addr %s22, 2
          %s254 = smul.addr %s253, 4
          %s255 = scalar_lea.hbm %s3, %s254
          %s257 = sshll.u32 %s255, 4
          %s258 = int_to_ptr.hbm [resolvable:$true] %s257
          %s259 = sshll.u32 %s250, 4
          %s260 = int_to_ptr.vmem [resolvable:$true] %s259
          %262 = dma.hbm_to_vmem [thread:$0]  %s258, 128, %s260, %s247
        $region32: #{tpu_custom_call.1} parent=19 // pred_fallthru
          _
      $region20: #{tpu_custom_call.1} parent=5 // pred_fallthru
        _
      %p263 = scmp.le.s32.totalorder 1, %s22
      %p264 = scmp.lt.s32.totalorder %s22, 3
      %p265 = pnand %p263, %p264
      %p266 = pneg %p265
      // Predicated region
      $region33: #{tpu_custom_call.1} parent=5 // pred_check
        _
      $region34: #{tpu_custom_call.1} parent=5 // pred_check_branch
        %268 = sbr.rel (%p265) target = $region36
      $region35: #{tpu_custom_call.1} parent=5 // pred_region
        %s269 = ssub.s32 %s22, 1
        // Predicated region
        $region37: #{tpu_custom_call.1} parent=35 // pred_check
          %p270 = pneg %p43
        $region38: #{tpu_custom_call.1} parent=35 // pred_check_branch
          %272 = sbr.rel (%p270) target = $region40
        $region39: #{tpu_custom_call.1} parent=35 // pred_region
          %274 = dma.done [#allocation3], 64
        $region40: #{tpu_custom_call.1} parent=35 // pred_fallthru
          _
        %s275 = sand.u32 %s27, 1
        %s276 = scalar_lea.sflag [#allocation6], %s275
        %s277 = sand.u32 %s56, 1
        %s278 = scalar_lea.vmem [#allocation5], %s277
        // Predicated region
        $region41: #{tpu_custom_call.1} parent=35 // pred_check
          %p279 = pneg %p69
        $region42: #{tpu_custom_call.1} parent=35 // pred_check_branch
          %281 = sbr.rel (%p279) target = $region44
        $region43: #{tpu_custom_call.1} parent=35 // pred_region
          %283 = dma.done %s276, 16
        $region44: #{tpu_custom_call.1} parent=35 // pred_fallthru
          _
        %s284 = sand.u32 %s27, 1
        %s285 = scalar_lea.sflag [#allocation6], %s284
        %s286 = sand.u32 %s82, 1
        %s287 = smul.addr %s286, 16
        %s288 = scalar_lea.vmem [#allocation7], %s287
        // Predicated region
        $region45: #{tpu_custom_call.1} parent=35 // pred_check
          %p289 = pneg %p95
        $region46: #{tpu_custom_call.1} parent=35 // pred_check_branch
          %291 = sbr.rel (%p289) target = $region48
        $region47: #{tpu_custom_call.1} parent=35 // pred_region
          %293 = dma.done %s285, 256
        $region48: #{tpu_custom_call.1} parent=35 // pred_fallthru
          _
        %s294 = sand.u32 %s108, 1
        %s295 = scalar_lea.sflag [#allocation9], %s294
        %s296 = sand.u32 %s108, 1
        %s297 = smul.addr %s296, 8
        %s298 = scalar_lea.vmem [#allocation8], %s297
        // Predicated region
        $region49: #{tpu_custom_call.1} parent=35 // pred_check
          %p299 = pneg %p121
        $region50: #{tpu_custom_call.1} parent=35 // pred_check_branch
          %301 = sbr.rel (%p299) target = $region52
        $region51: #{tpu_custom_call.1} parent=35 // pred_region
          %303 = dma.done %s295, 128
        $region52: #{tpu_custom_call.1} parent=35 // pred_fallthru
          _
        %p304 = pneg %p43
        %p305 = pneg %p40
        %s306 = sand.u32 %s27, 1
        %s307 = scalar_lea.sflag [#allocation6], %s306
        %s308 = sand.u32 %s56, 1
        %s309 = scalar_lea.vmem [#allocation5], %s308
        %p310 = pneg %p69
        %p311 = pneg %p66
        %s312 = sand.u32 %s27, 1
        %s313 = scalar_lea.sflag [#allocation6], %s312
        %s314 = sand.u32 %s82, 1
        %s315 = smul.addr %s314, 16
        %s316 = scalar_lea.vmem [#allocation7], %s315
        %p317 = pneg %p95
        %p318 = pneg %p92
        %s319 = sand.u32 %s108, 1
        %s320 = scalar_lea.sflag [#allocation9], %s319
        %s321 = sand.u32 %s108, 1
        %s322 = smul.addr %s321, 8
        %s323 = scalar_lea.vmem [#allocation8], %s322
        %p324 = pneg %p121
        %p325 = pneg %p118
        %p326 = pneg %p147
        %p327 = pneg %p144
        %s328 = sand.u32 %s134, 1
        %s329 = scalar_lea.sflag [#allocation4], %s328
        %s330 = sand.u32 %s134, 1
        %s331 = smul.addr %s330, 56
        %s332 = scalar_lea.vmem [#allocation10], %s331
        %p333 = pneg %p173
        %p334 = pneg %p170
        %p335 = scmp.lt.s32.totalorder %s27, 1
        %s336 = scalar_select %p335, %s27, 1
        %s337 = smul.addr %s336, 2
        %s338 = smul.addr %s337, 8
        %s339 = scalar_lea.vmem %s5, %s338
        %p340 = scmp.lt.s32.totalorder %s27, 1
        %s341 = scalar_select %p340, %s27, 1
        %s342 = smul.addr %s341, 2
        %s343 = smul.addr %s342, 8
        %s344 = scalar_lea.vmem %s5, %s343
        %v346 = vld [vmem:[%s288] sm:$0xff]
        %v347 = vld [vmem:[%s288 + $0x8] sm:$0xff]
        %v348 = vld [vmem:[%s298] sm:$0xff]
        %v349 = vunpack.c.l.bf16 %v346
        %v350 = vunpack.c.h.bf16 %v346
        %v351 = vunpack.c.l.bf16 %v347
        %v352 = vunpack.c.h.bf16 %v347
        %v353 = vld [vmem:[#allocation2] sm:$0xf]
        %v354 = vld [vmem:[%s278] sm:$0x1]
        %v356 = vperm.slane %v353, 0
        %v357 = vperm.slane %v353, 2
        %v360 = vperm.slane %v356, 0
        %v361 = vperm.slane %v357, 0
        %v362 = vmul.f32 %v349, %v360
        %v363 = vmul.f32 %v350, %v361
        %v364 = vmul.f32 %v351, %v360
        %v365 = vmul.f32 %v352, %v361
        %vm366 = vcmask 588800
        %v367 = vsel %vm366, %v363, 0.0
        %v368 = vadd.f32 %v362, %v367
        %369 = vadd.xlane.f32.xlu0 %v368
        %v370 = vpop.xlane.xlu0 %369
        %v371 = vsel %vm366, %v365, 0.0
        %v372 = vadd.f32 %v364, %v371
        %373 = vadd.xlane.f32.xlu0 %v372
        %v374 = vpop.xlane.xlu0 %373
        %v375 = vperm.slane %v353, 1
        %v376 = vperm.slane %v353, 3
        %v379 = vperm.slane %v375, 1
        %v380 = vperm.slane %v376, 1
        %v381 = vmul.f32 %v349, %v379
        %v382 = vmul.f32 %v350, %v380
        %v383 = vmul.f32 %v351, %v379
        %v384 = vmul.f32 %v352, %v380
        %v385 = vpack.c.bf16 %v382, %v381
        %v386 = vpack.c.bf16 %v384, %v383
        %v389 = vunpack.c.l.b16 %v385
        %v390 = vunpack.c.h.b16 %v385
        %v391 = vunpack.c.l.b16 %v386
        %v392 = vunpack.c.h.b16 %v386
        %v393 = vpack.c.b16 %v391, %v389
        %v394 = vpack.c.b16 %v392, %v390
        %v397 = vunpack.c.l.b16 %v348
        %v398 = vunpack.c.h.b16 %v348
        %v399 = vpack.c.b16 %v397, %v397
        %v400 = vpack.c.b16 %v398, %v398
        %v403 = vsel %vm366, %v394, 0
        %v406 = vsel %vm366, %v400, 0
        %408 = vmatpush.bf16.xpose.msra.mxu0 0
        %409 = vmatpush.bf16.xpose.msra.mxu0 0
        %410 = vmatpush.bf16.xpose.msra.mxu0 0
        %411 = vmatpush.bf16.xpose.msra.mxu0 0
        %412 = vmatpush.bf16.xpose.msra.mxu0 0
        %413 = vmatpush.bf16.xpose.msra.mxu0 0
        %414 = vmatpush.bf16.xpose.msra.mxu0 0
        %415 = vmatpush.bf16.xpose.msra.mxu0 %v399
        %416 = vmatmul.bf16.gmra.mxu0 %v393
        %v417 = vpop.f32.mrf.mxu0
        %v418 = vadd.f32 %v370, %v417
        %v419 = vpop.f32.mrf.mxu0
        %v420 = vadd.f32 %v374, %v419
        %421 = vdwg.mxu0
        %422 = vmatpush.bf16.xpose.msra.mxu0 0
        %423 = vmatpush.bf16.xpose.msra.mxu0 0
        %424 = vmatpush.bf16.xpose.msra.mxu0 0
        %425 = vmatpush.bf16.xpose.msra.mxu0 0
        %426 = vmatpush.bf16.xpose.msra.mxu0 0
        %427 = vmatpush.bf16.xpose.msra.mxu0 0
        %428 = vmatpush.bf16.xpose.msra.mxu0 0
        %429 = vmatpush.bf16.xpose.msra.mxu0 %v406
        %430 = vmatmul.bf16.gmra.mxu0 %v403
        %v431 = vpop.f32.mrf.mxu0
        %v432 = vadd.f32 %v418, %v431
        %v433 = vpop.f32.mrf.mxu0
        %v434 = vadd.f32 %v420, %v433
        %435 = vdwg.mxu0
        %v437 = vperm.slane %v354, 0
        %v439 = vadd.f32 %v432, %v437
        %v440 = vadd.f32 %v434, %v437
        %vm441 = vcmask 64512
        %v442 = vsel %vm441, %v439, -inf
        %443 = vmax.xlane.f32.xlu0 %v442
        %v444 = vpop.xlane.xlu0 %443
        %v445 = vsel %vm441, %v440, -inf
        %446 = vmax.xlane.f32.xlu0 %v445
        %v447 = vpop.xlane.xlu0 %446
        %v448 = vsub.f32 %v439, %v444
        %v449 = vsub.f32 %v440, %v447
        %v450 = vmul.f32 %v448, 1.442695
        %v451 = vpow.pop %v450
        %v452 = vmul.f32 %v449, 1.442695
        %v453 = vpow.pop %v452
        %v454 = vsel %vm441, %v451, 0.0
        %455 = vadd.xlane.f32.xlu0 %v454
        %v456 = vpop.xlane.xlu0 %455
        %v457 = vsel %vm441, %v453, 0.0
        %458 = vadd.xlane.f32.xlu0 %v457
        %v459 = vpop.xlane.xlu0 %458
        %v460 = vrcp.pop %v456
        %v461 = vrcp.pop %v459
        %v462 = vmul.f32 %v451, %v460
        %v463 = vmul.f32 %v453, %v461
        %v464 = vpack.c.bf16 %v462, %v462
        %v465 = vpack.c.bf16 %v463, %v463
        %v468 = vunpack.c.l.b16 %v464
        %v469 = vunpack.c.l.b16 %v465
        %v470 = vpack.c.b16 %v469, %v468
        %v472 = vsel %vm441, %v470, 0
        %vm474 = vcmask 1043456
        %v476 = vsel %vm474, %v399, 0
        %v478 = vsel %vm474, %v400, 0
        %480 = vmatpush.bf16.msra.mxu0 0
        %481 = vmatpush.bf16.msra.mxu0 0
        %482 = vmatpush.bf16.msra.mxu0 0
        %483 = vmatpush.bf16.msra.mxu0 0
        %484 = vmatpush.bf16.msra.mxu0 0
        %485 = vmatpush.bf16.msra.mxu0 0
        %486 = vmatpush.bf16.msra.mxu0 0
        %487 = vmatpush.bf16.msra.mxu0 %v476
        %488 = vmatmul.bf16.gmra.mxu0 %v472
        %v489 = vpop.f32.mrf.mxu0
        %v490 = vadd.f32 0.0, %v489
        %v491 = vpop.f32.mrf.mxu0
        %v492 = vadd.f32 0.0, %v491
        %493 = vdwg.mxu0
        %494 = vmatpush.bf16.msra.mxu0 0
        %495 = vmatpush.bf16.msra.mxu0 0
        %496 = vmatpush.bf16.msra.mxu0 0
        %497 = vmatpush.bf16.msra.mxu0 0
        %498 = vmatpush.bf16.msra.mxu0 0
        %499 = vmatpush.bf16.msra.mxu0 0
        %500 = vmatpush.bf16.msra.mxu0 0
        %501 = vmatpush.bf16.msra.mxu0 %v478
        %502 = vmatmul.bf16.gmra.mxu0 %v472
        %v503 = vpop.f32.mrf.mxu0
        %v504 = vadd.f32 0.0, %v503
        %v505 = vpop.f32.mrf.mxu0
        %v506 = vadd.f32 0.0, %v505
        %507 = vdwg.mxu0
        %v508 = vmax.f32 %v444, %v447
        %v509 = vrot.slane %v508, 4
        %v510 = vmax.f32 %v508, %v509
        %v511 = vrot.slane %v510, 2
        %v512 = vmax.f32 %v510, %v511
        %v513 = vrot.slane %v512, 1
        %v514 = vmax.f32 %v512, %v513
        %v515 = vsub.f32 %v444, %v514
        %v516 = vsub.f32 %v447, %v514
        %v517 = vmul.f32 %v515, 1.442695
        %v518 = vpow.pop %v517
        %v519 = vmul.f32 %v516, 1.442695
        %v520 = vpow.pop %v519
        %v521 = vadd.f32 %v518, %v520
        %v522 = vrot.slane %v521, 4
        %v523 = vadd.f32 %v521, %v522
        %v524 = vrot.slane %v523, 2
        %v525 = vadd.f32 %v523, %v524
        %v526 = vrot.slane %v525, 1
        %v527 = vadd.f32 %v525, %v526
        %v528 = vrcp.pop %v527
        %v529 = vmul.f32 %v527, %v528
        %v530 = vsub.f32 1.0, %v529
        %v531 = vmul.f32 %v528, %v530
        %v532 = vadd.f32 %v528, %v531
        %vm533 = vweird.f32 %v527
        %vm534 = vweird.f32 %v528
        %vm535 = vmor %vm533, %vm534
        %v536 = vsel %vm535, %v528, %v532
        %v537 = vand.u32 2147483647, %v527
        %vm538 = vcmp.eq.f32.partialorder %v537, 8.507059e+37
        %v539 = vand.u32 %v527, 2147483648
        %v540 = vor.u32 1.1754944e-38, %v539
        %v541 = vsel %vm538, %v540, %v536
        %v542 = vmul.f32 %v518, %v541
        %v543 = vmul.f32 %v520, %v541
        %v544 = vmul.f32 %v542, %v349
        %v545 = vmul.f32 %v542, %v350
        %v546 = vmul.f32 %v543, %v351
        %v547 = vmul.f32 %v543, %v352
        %v548 = vadd.f32 %v544, %v546
        %v549 = vrot.slane %v548, 4
        %v550 = vadd.f32 %v548, %v549
        %v551 = vrot.slane %v550, 2
        %v552 = vadd.f32 %v550, %v551
        %v553 = vrot.slane %v552, 1
        %v554 = vadd.f32 %v552, %v553
        %v555 = vsel %vm366, %v545, 0.0
        %v556 = vsel %vm366, %v547, 0.0
        %v557 = vadd.f32 %v555, %v556
        %v558 = vrot.slane %v557, 4
        %v559 = vadd.f32 %v557, %v558
        %v560 = vrot.slane %v559, 2
        %v561 = vadd.f32 %v559, %v560
        %v562 = vrot.slane %v561, 1
        %v563 = vadd.f32 %v561, %v562
        %v564 = vmul.f32 %v349, %v490
        %v565 = vmul.f32 %v350, %v504
        %v566 = vmul.f32 %v351, %v492
        %v567 = vmul.f32 %v352, %v506
        %v568 = vmul.f32 %v349, %v554
        %v569 = vmul.f32 %v350, %v563
        %v570 = vmul.f32 %v351, %v554
        %v571 = vmul.f32 %v352, %v563
        %576 = vrot.lane.b32.xlu0 %v490, 72
        %v577 = vpop.permute.xlu0 %576
        %578 = vrot.lane.b32.xlu0 %v504, 72
        %v579 = vpop.permute.xlu0 %578
        %580 = vrot.lane.b32.xlu0 %v492, 72
        %v581 = vpop.permute.xlu0 %580
        %582 = vrot.lane.b32.xlu0 %v506, 72
        %v583 = vpop.permute.xlu0 %582
        %v584 = vsel %vm366, %v577, %v579
        %v585 = vsel %vm366, %v581, %v583
        %596 = vrot.lane.b32.xlu0 %v564, 16
        %v597 = vpop.permute.xlu0 %596
        %598 = vrot.lane.b32.xlu0 %v565, 16
        %v599 = vpop.permute.xlu0 %598
        %600 = vrot.lane.b32.xlu0 %v566, 16
        %v601 = vpop.permute.xlu0 %600
        %602 = vrot.lane.b32.xlu0 %v567, 16
        %v603 = vpop.permute.xlu0 %602
        %vm604 = vcmask 130048
        %v605 = vsel %vm604, %v597, %v599
        %v606 = vsel %vm604, %v601, %v603
        %615 = vrot.lane.b32.xlu0 %v568, 88
        %v616 = vpop.permute.xlu0 %615
        %617 = vrot.lane.b32.xlu0 %v569, 88
        %v618 = vpop.permute.xlu0 %617
        %619 = vrot.lane.b32.xlu0 %v570, 88
        %v620 = vpop.permute.xlu0 %619
        %621 = vrot.lane.b32.xlu0 %v571, 88
        %v622 = vpop.permute.xlu0 %621
        %vm623 = vcmask 719872
        %v624 = vsel %vm623, %v616, %v618
        %v625 = vsel %vm623, %v620, %v622
        %v632 = vsel %vm366, %v350, %v577
        %v633 = vsel %vm366, %v352, %v581
        %v634 = vsel %vm604, %v579, %v597
        %v635 = vsel %vm604, %v583, %v601
        %v636 = vsel %vm623, %v605, %v616
        %v637 = vsel %vm623, %v606, %v620
        %v638 = vpack.c.bf16 %v632, %v349
        %v639 = vpack.c.bf16 %v634, %v584
        %v640 = vpack.c.bf16 %v624, %v636
        %v641 = vpack.c.bf16 %v618, %v618
        %v642 = vpack.c.bf16 %v633, %v351
        %v643 = vpack.c.bf16 %v635, %v585
        %v644 = vpack.c.bf16 %v625, %v637
        %v645 = vpack.c.bf16 %v622, %v622
        %646 = vst [vmem:[%s332] sm:$0xff] %v638
        %647 = vst [vmem:[%s332 + $0x8] sm:$0xff] %v639
        %648 = vst [vmem:[%s332 + $0x10] sm:$0xff] %v640
        %vm649 = vcmask 257024
        %650 = vst.msk [vmem:[%s332 + $0x18] sm:$0xf] %vm649, %v641
        %651 = vst [vmem:[%s332 + $0x1c] sm:$0xff] %v642
        %652 = vst [vmem:[%s332 + $0x24] sm:$0xff] %v643
        %653 = vst [vmem:[%s332 + $0x2c] sm:$0xff] %v644
        %654 = vst.msk [vmem:[%s332 + $0x34] sm:$0xf] %vm649, %v645
        %vm655 = vcmask 7168
        %656 = vst.msk [vmem:[%s344] sm:$0xff] %vm655, %v542
        %657 = vst.msk [vmem:[%s344 + $0x8] sm:$0xff] %vm655, %v543
        %s658 = sand.u32 %s134, 1
        %s659 = scalar_lea.sflag [#allocation4], %s658
        %s660 = sand.u32 %s134, 1
        %s661 = smul.addr %s660, 56
        %s662 = scalar_lea.vmem [#allocation10], %s661
        %p663 = scmp.lt.s32.totalorder %s27, 1
        %s664 = scalar_select %p663, %s27, 1
        %s665 = smul.addr %s664, 2
        %s666 = smul.addr %s665, 8
        %s667 = scalar_lea.vmem %s5, %s666
        // Predicated region
        $region53: #{tpu_custom_call.1} parent=35 // pred_check
          %p668 = pneg %p144
        $region54: #{tpu_custom_call.1} parent=35 // pred_check_branch
          %670 = sbr.rel (%p668) target = $region56
        $region55: #{tpu_custom_call.1} parent=35 // pred_region
          %672 = vsyncadd %s659, 0
          %s673 = smul.addr %s27, 14
          %s674 = smul.addr %s673, 4
          %s675 = scalar_lea.hbm %s4, %s674
          %s676 = sshll.u32 %s662, 4
          %s677 = int_to_ptr.vmem [resolvable:$true] %s676
          %s678 = sshll.u32 %s675, 4
          %s679 = int_to_ptr.hbm [resolvable:$true] %s678
          %684 = dma.vmem_to_hbm [thread:$0]  %s677, 896, %s679, %s659, 448, 448, 28
        $region56: #{tpu_custom_call.1} parent=35 // pred_fallthru
          _
        // Predicated region
        $region57: #{tpu_custom_call.1} parent=35 // pred_check
          %p685 = pneg %p170
        $region58: #{tpu_custom_call.1} parent=35 // pred_check_branch
          %687 = sbr.rel (%p685) target = $region60
        $region59: #{tpu_custom_call.1} parent=35 // pred_region
          _
        $region60: #{tpu_custom_call.1} parent=35 // pred_fallthru
          _
      $region36: #{tpu_custom_call.1} parent=5 // pred_fallthru
        _
      %p688 = scmp.le.s32.totalorder 2, %s22
      // Predicated region
      $region61: #{tpu_custom_call.1} parent=5 // pred_check
        %p689 = pneg %p688
      $region62: #{tpu_custom_call.1} parent=5 // pred_check_branch
        %691 = sbr.rel (%p689) target = $region64
      $region63: #{tpu_custom_call.1} parent=5 // pred_region
        %s692 = ssub.s32 %s22, 2
        // Predicated region
        $region65: #{tpu_custom_call.1} parent=63 // pred_check
          %p693 = pneg %p150
        $region66: #{tpu_custom_call.1} parent=63 // pred_check_branch
          %695 = sbr.rel (%p693) target = $region68
        $region67: #{tpu_custom_call.1} parent=63 // pred_region
          %s696 = sand.u32 %s135, 1
          %s697 = scalar_lea.sflag [#allocation4], %s696
          %s698 = sand.u32 %s135, 1
          %s699 = smul.addr %s698, 56
          %s700 = scalar_lea.vmem [#allocation10], %s699
          %702 = dma.done %s697, 896
        $region68: #{tpu_custom_call.1} parent=63 // pred_fallthru
          _
        // Predicated region
        $region69: #{tpu_custom_call.1} parent=63 // pred_check
          %p703 = pneg %p176
        $region70: #{tpu_custom_call.1} parent=63 // pred_check_branch
          %705 = sbr.rel (%p703) target = $region72
        $region71: #{tpu_custom_call.1} parent=63 // pred_region
          %p706 = scmp.lt.s32.totalorder %s28, 1
          %s707 = scalar_select %p706, %s28, 1
          %s708 = smul.addr %s707, 2
          %s709 = smul.addr %s708, 8
          %s710 = scalar_lea.vmem %s5, %s709
        $region72: #{tpu_custom_call.1} parent=63 // pred_fallthru
          _
      $region64: #{tpu_custom_call.1} parent=5 // pred_fallthru
        _
    $region6: #{tpu_custom_call.1} parent=1 // loop_footer
      %s26 = sadd.s32 1, %s22
    $region7: #{tpu_custom_call.1} parent=1 // loop_footer_branch
      %21 = sbr.rel target = $region3
    $region8: #{tpu_custom_call.1} parent=1 // loop_exit
      _
    %711 = vsyncpa [#allocation3], 1
    %s712 = scalar_lea.sflag [#allocation3], 1
    %713 = vsyncpa %s712, 1
    %714 = vsyncpa [#allocation6], 1
    %s715 = scalar_lea.sflag [#allocation6], 1
    %716 = vsyncpa %s715, 1
    %717 = vsyncpa [#allocation9], 1
    %s718 = scalar_lea.sflag [#allocation9], 1
    %719 = vsyncpa %s718, 1
    %720 = vsyncpa [#allocation4], 1
    %s721 = scalar_lea.sflag [#allocation4], 1
    %722 = vsyncpa %s721, 1

// kernel: tpu_custom_call.1
$region0: #{tpu_custom_call.1}
  #allocation0 [shape = 'u32[]', space=smem, size = 0x4, offset = 0x4, fixed_abs, tag = 'smem constant byte address 0x4 - core index']
  #allocation1 [shape = 'u32[72,128]{1,0:T(1,128)}', space=vmem, size = 0x9000, scoped, tag = 'internal scratch']
  %s0 = inlined_call_operand.hbm [shape: f32[2,200], index: 0, kind: input, shape index: {}]
  %s1 = inlined_call_operand.hbm [shape: f32[2,1,8], index: 1, kind: input, shape index: {}]
  %s2 = inlined_call_operand.hbm [shape: bf16[2,16,200], index: 2, kind: input, shape index: {}]
  %s3 = inlined_call_operand.hbm [shape: bf16[2,8,200], index: 3, kind: input, shape index: {}]
  %s4 = inlined_call_operand.hbm [shape: bf16[2,16,200], index: 4, kind: output, shape index: {0}]
  %s5 = inlined_call_operand.hbm [shape: bf16[2,16,200], index: 5, kind: output, shape index: {1}]
  %s6 = inlined_call_operand.hbm [shape: bf16[2,16,200], index: 6, kind: output, shape index: {2}]
  %s7 = inlined_call_operand.vmem [shape: f32[2,16,1], index: 7, kind: output, shape index: {3}]
  %8 = xla_tuple %s4, %s5, %s6, %s7
  %s9 = sld [smem:[#allocation0]]
  $region89: #{tpu_custom_call.1} parent=0
    _
  %s11 = ssub.s32 1, %s9
  %s12 = scalar_select 0, %s11, %s9
  $region1: #{tpu_custom_call.1} parent=0
    #allocation2 [shape = 'u8[2048]{0}', space=vmem, size = 0x800, scoped, tag = 'input window, operand 0, single buffered']
    #allocation3 [shape = 's32[2]{0}', space=sflag, size = 0x8, scoped, tag = 'scoped memory for tpu_custom_call.1']
    #allocation4 [shape = 's32[2]{0}', space=sflag, size = 0x8, scoped, tag = 'scoped memory for tpu_custom_call.1']
    #allocation5 [shape = 'u8[1024]{0}', space=vmem, size = 0x400, scoped, tag = 'input window, operand 1']
    #allocation6 [shape = 's32[2]{0}', space=sflag, size = 0x8, scoped, tag = 'scoped memory for tpu_custom_call.1']
    #allocation7 [shape = 'u8[16384]{0}', space=vmem, size = 0x4000, scoped, tag = 'input window, operand 2']
    #allocation8 [shape = 'u8[8192]{0}', space=vmem, size = 0x2000, scoped, tag = 'input window, operand 3']
    #allocation9 [shape = 's32[2]{0}', space=sflag, size = 0x8, scoped, tag = 'scoped memory for tpu_custom_call.1']
    #allocation10 [shape = 'u8[16384]{0}', space=vmem, size = 0x4000, scoped, tag = 'output window, operand 0']
    #allocation11 [shape = 'u8[16384]{0}', space=vmem, size = 0x4000, scoped, tag = 'output window, operand 1']
    #allocation12 [shape = 's32[2]{0}', space=sflag, size = 0x8, scoped, tag = 'scoped memory for tpu_custom_call.1']
    #allocation13 [shape = 'u8[16384]{0}', space=vmem, size = 0x4000, scoped, tag = 'output window, operand 2']
    %13 = vsyncpa [#allocation3], 0
    %14 = vsyncpa [#allocation6], 0
    %s15 = scalar_lea.sflag [#allocation6], 1
    %16 = vsyncpa %s15, 0
    %17 = vsyncpa [#allocation9], 0
    %s18 = scalar_lea.sflag [#allocation9], 1
    %19 = vsyncpa %s18, 0
    %20 = vsyncpa [#allocation4], 0
    %s21 = scalar_lea.sflag [#allocation4], 1
    %22 = vsyncpa %s21, 0
    %23 = vsyncpa [#allocation12], 0
    %s24 = scalar_lea.sflag [#allocation12], 1
    %25 = vsyncpa %s24, 0
    loop: start=0, step=1, limit=4
    $region2: #{tpu_custom_call.1} parent=1 // loop_pre_header
      _
    $region3: #{tpu_custom_call.1} parent=1 // loop_header
      %s27 = sphi 0, %s31
      %p28 = scmp.ge.s32.totalorder %s27, 4
      %s35 = sphi 0, %s35
      %s37 = sphi 0, %s35
      %s38 = sphi 0, %s37
      %s52 = sphi 0, %s38
      %s58 = sphi 0, %s60
      %s61 = sphi 0, %s58
      %s62 = sphi 0, %s61
      %s78 = sphi 0, %s62
      %s84 = sphi 0, %s86
      %s87 = sphi 0, %s84
      %s88 = sphi 0, %s87
      %s104 = sphi 0, %s88
      %s110 = sphi 0, %s112
      %s113 = sphi 0, %s110
      %s114 = sphi 0, %s113
      %s130 = sphi 0, %s114
      %s136 = sphi 0, %s138
      %s139 = sphi 0, %s136
      %s140 = sphi 0, %s139
      %s156 = sphi 0, %s140
      %s162 = sphi 0, %s164
      %s165 = sphi 0, %s162
      %s166 = sphi 0, %s165
      %s182 = sphi 0, %s166
      %s188 = sphi 0, %s190
      %s191 = sphi 0, %s188
      %s192 = sphi 0, %s191
      %s208 = sphi 0, %s192
      %s214 = sphi 0, %s216
      %s217 = sphi 0, %s214
      %s218 = sphi 0, %s217
      %s234 = sphi 0, %s218
    $region4: #{tpu_custom_call.1} parent=1 // loop_header_branch
      %30 = sbr.rel (%p28) target = $region8
    $region5: #{tpu_custom_call.1} parent=1 // loop_body
      %s32 = ssub.s32 %s27, 1
      %s33 = ssub.s32 %s27, 2
      %s34 = sadd.s32 %s27, 1
      %s36 = sadd.s32 %s35, 1
      %p39 = scmp.eq.s32.totalorder %s27, 1
      %p40 = scmp.ne.s32.totalorder %s35, %s37
      %p41 = scmp.eq.s32.totalorder %s27, 0
      %p42 = por %p40, %p41
      %p43 = scmp.ne.s32.totalorder %s35, %s37
      %p44 = scmp.eq.s32.totalorder %s32, 1
      %p45 = por %p43, %p44
      %p46 = scmp.ne.s32.totalorder %s37, %s38
      %p47 = scmp.eq.s32.totalorder %s32, 0
      %p48 = por %p46, %p47
      %p49 = scmp.ne.s32.totalorder %s37, %s38
      %p50 = scmp.eq.s32.totalorder %s33, 1
      %p51 = por %p49, %p50
      %p53 = scmp.ne.s32.totalorder %s38, %s52
      %p54 = scmp.eq.s32.totalorder %s33, 0
      %p55 = por %p53, %p54
      %s56 = ssub.s32 %s27, %s34
      %p57 = scmp.eq.s32.totalorder %s56, 0
      %s59 = sadd.s32 %s58, 1
      %s60 = scalar_select %p57, %s58, %s59
      %p63 = pneg %p57
      %p64 = scmp.eq.s32.totalorder %s27, 1
      %p65 = por %p63, %p64
      %p66 = scmp.ne.s32.totalorder %s58, %s61
      %p67 = scmp.eq.s32.totalorder %s27, 0
      %p68 = por %p66, %p67
      %p69 = scmp.ne.s32.totalorder %s58, %s61
      %p70 = scmp.eq.s32.totalorder %s32, 1
      %p71 = por %p69, %p70
      %p72 = scmp.ne.s32.totalorder %s61, %s62
      %p73 = scmp.eq.s32.totalorder %s32, 0
      %p74 = por %p72, %p73
      %p75 = scmp.ne.s32.totalorder %s61, %s62
      %p76 = scmp.eq.s32.totalorder %s33, 1
      %p77 = por %p75, %p76
      %p79 = scmp.ne.s32.totalorder %s62, %s78
      %p80 = scmp.eq.s32.totalorder %s33, 0
      %p81 = por %p79, %p80
      %s82 = ssub.s32 %s27, %s34
      %p83 = scmp.eq.s32.totalorder %s82, 0
      %s85 = sadd.s32 %s84, 1
      %s86 = scalar_select %p83, %s84, %s85
      %p89 = pneg %p83
      %p90 = scmp.eq.s32.totalorder %s27, 1
      %p91 = por %p89, %p90
      %p92 = scmp.ne.s32.totalorder %s84, %s87
      %p93 = scmp.eq.s32.totalorder %s27, 0
      %p94 = por %p92, %p93
      %p95 = scmp.ne.s32.totalorder %s84, %s87
      %p96 = scmp.eq.s32.totalorder %s32, 1
      %p97 = por %p95, %p96
      %p98 = scmp.ne.s32.totalorder %s87, %s88
      %p99 = scmp.eq.s32.totalorder %s32, 0
      %p100 = por %p98, %p99
      %p101 = scmp.ne.s32.totalorder %s87, %s88
      %p102 = scmp.eq.s32.totalorder %s33, 1
      %p103 = por %p101, %p102
      %p105 = scmp.ne.s32.totalorder %s88, %s104
      %p106 = scmp.eq.s32.totalorder %s33, 0
      %p107 = por %p105, %p106
      %s108 = ssub.s32 %s27, %s34
      %p109 = scmp.eq.s32.totalorder %s108, 0
      %s111 = sadd.s32 %s110, 1
      %s112 = scalar_select %p109, %s110, %s111
      %p115 = pneg %p109
      %p116 = scmp.eq.s32.totalorder %s27, 1
      %p117 = por %p115, %p116
      %p118 = scmp.ne.s32.totalorder %s110, %s113
      %p119 = scmp.eq.s32.totalorder %s27, 0
      %p120 = por %p118, %p119
      %p121 = scmp.ne.s32.totalorder %s110, %s113
      %p122 = scmp.eq.s32.totalorder %s32, 1
      %p123 = por %p121, %p122
      %p124 = scmp.ne.s32.totalorder %s113, %s114
      %p125 = scmp.eq.s32.totalorder %s32, 0
      %p126 = por %p124, %p125
      %p127 = scmp.ne.s32.totalorder %s113, %s114
      %p128 = scmp.eq.s32.totalorder %s33, 1
      %p129 = por %p127, %p128
      %p131 = scmp.ne.s32.totalorder %s114, %s130
      %p132 = scmp.eq.s32.totalorder %s33, 0
      %p133 = por %p131, %p132
      %s134 = ssub.s32 %s27, %s34
      %p135 = scmp.eq.s32.totalorder %s134, 0
      %s137 = sadd.s32 %s136, 1
      %s138 = scalar_select %p135, %s136, %s137
      %p141 = pneg %p135
      %p142 = scmp.eq.s32.totalorder %s27, 1
      %p143 = por %p141, %p142
      %p144 = scmp.ne.s32.totalorder %s136, %s139
      %p145 = scmp.eq.s32.totalorder %s27, 0
      %p146 = por %p144, %p145
      %p147 = scmp.ne.s32.totalorder %s136, %s139
      %p148 = scmp.eq.s32.totalorder %s32, 1
      %p149 = por %p147, %p148
      %p150 = scmp.ne.s32.totalorder %s139, %s140
      %p151 = scmp.eq.s32.totalorder %s32, 0
      %p152 = por %p150, %p151
      %p153 = scmp.ne.s32.totalorder %s139, %s140
      %p154 = scmp.eq.s32.totalorder %s33, 1
      %p155 = por %p153, %p154
      %p157 = scmp.ne.s32.totalorder %s140, %s156
      %p158 = scmp.eq.s32.totalorder %s33, 0
      %p159 = por %p157, %p158
      %s160 = ssub.s32 %s27, %s34
      %p161 = scmp.eq.s32.totalorder %s160, 0
      %s163 = sadd.s32 %s162, 1
      %s164 = scalar_select %p161, %s162, %s163
      %p167 = pneg %p161
      %p168 = scmp.eq.s32.totalorder %s27, 1
      %p169 = por %p167, %p168
      %p170 = scmp.ne.s32.totalorder %s162, %s165
      %p171 = scmp.eq.s32.totalorder %s27, 0
      %p172 = por %p170, %p171
      %p173 = scmp.ne.s32.totalorder %s162, %s165
      %p174 = scmp.eq.s32.totalorder %s32, 1
      %p175 = por %p173, %p174
      %p176 = scmp.ne.s32.totalorder %s165, %s166
      %p177 = scmp.eq.s32.totalorder %s32, 0
      %p178 = por %p176, %p177
      %p179 = scmp.ne.s32.totalorder %s165, %s166
      %p180 = scmp.eq.s32.totalorder %s33, 1
      %p181 = por %p179, %p180
      %p183 = scmp.ne.s32.totalorder %s166, %s182
      %p184 = scmp.eq.s32.totalorder %s33, 0
      %p185 = por %p183, %p184
      %s186 = ssub.s32 %s27, %s34
      %p187 = scmp.eq.s32.totalorder %s186, 0
      %s189 = sadd.s32 %s188, 1
      %s190 = scalar_select %p187, %s188, %s189
      %p193 = pneg %p187
      %p194 = scmp.eq.s32.totalorder %s27, 1
      %p195 = por %p193, %p194
      %p196 = scmp.ne.s32.totalorder %s188, %s191
      %p197 = scmp.eq.s32.totalorder %s27, 0
      %p198 = por %p196, %p197
      %p199 = scmp.ne.s32.totalorder %s188, %s191
      %p200 = scmp.eq.s32.totalorder %s32, 1
      %p201 = por %p199, %p200
      %p202 = scmp.ne.s32.totalorder %s191, %s192
      %p203 = scmp.eq.s32.totalorder %s32, 0
      %p204 = por %p202, %p203
      %p205 = scmp.ne.s32.totalorder %s191, %s192
      %p206 = scmp.eq.s32.totalorder %s33, 1
      %p207 = por %p205, %p206
      %p209 = scmp.ne.s32.totalorder %s192, %s208
      %p210 = scmp.eq.s32.totalorder %s33, 0
      %p211 = por %p209, %p210
      %s212 = ssub.s32 %s27, %s34
      %p213 = scmp.eq.s32.totalorder %s212, 0
      %s215 = sadd.s32 %s214, 1
      %s216 = scalar_select %p213, %s214, %s215
      %p219 = pneg %p213
      %p220 = scmp.eq.s32.totalorder %s27, 1
      %p221 = por %p219, %p220
      %p222 = scmp.ne.s32.totalorder %s214, %s217
      %p223 = scmp.eq.s32.totalorder %s27, 0
      %p224 = por %p222, %p223
      %p225 = scmp.ne.s32.totalorder %s214, %s217
      %p226 = scmp.eq.s32.totalorder %s32, 1
      %p227 = por %p225, %p226
      %p228 = scmp.ne.s32.totalorder %s217, %s218
      %p229 = scmp.eq.s32.totalorder %s32, 0
      %p230 = por %p228, %p229
      %p231 = scmp.ne.s32.totalorder %s217, %s218
      %p232 = scmp.eq.s32.totalorder %s33, 1
      %p233 = por %p231, %p232
      %p235 = scmp.ne.s32.totalorder %s218, %s234
      %p236 = scmp.eq.s32.totalorder %s33, 0
      %p237 = por %p235, %p236
      %p238 = scmp.le.s32.totalorder 1, %s27
      %p239 = scmp.lt.s32.totalorder %s27, 3
      %p240 = pnand %p238, %p239
      %p241 = pneg %p240
      // Predicated region
      $region9: #{tpu_custom_call.1} parent=5 // pred_check
        _
      $region10: #{tpu_custom_call.1} parent=5 // pred_check_branch
        %243 = sbr.rel (%p240) target = $region12
      $region11: #{tpu_custom_call.1} parent=5 // pred_region
        %s244 = ssub.s32 %s27, 1
        // Predicated region
        $region13: #{tpu_custom_call.1} parent=11 // pred_check
          %p245 = pneg %p48
        $region14: #{tpu_custom_call.1} parent=11 // pred_check_branch
          %247 = sbr.rel (%p245) target = $region16
        $region15: #{tpu_custom_call.1} parent=11 // pred_region
          %249 = vsyncadd [#allocation3], 0
          %s251 = sshll.u32 %s0, 4
          %s252 = int_to_ptr.hbm [resolvable:$true] %s251
          %s253 = sshll.u32 [#allocation2], 4
          %s254 = int_to_ptr.vmem [resolvable:$true] %s253
          %256 = dma.hbm_to_vmem [thread:$0]  %s252, 64, %s254, [#allocation3]
        $region16: #{tpu_custom_call.1} parent=11 // pred_fallthru
          _
      $region12: #{tpu_custom_call.1} parent=5 // pred_fallthru
        _
      %p257 = scmp.lt.s32.totalorder %s27, 2
      // Predicated region
      $region17: #{tpu_custom_call.1} parent=5 // pred_check
        %p258 = pneg %p257
      $region18: #{tpu_custom_call.1} parent=5 // pred_check_branch
        %260 = sbr.rel (%p258) target = $region20
      $region19: #{tpu_custom_call.1} parent=5 // pred_region
        // Predicated region
        $region21: #{tpu_custom_call.1} parent=19 // pred_check
          %p261 = pneg %p68
        $region22: #{tpu_custom_call.1} parent=19 // pred_check_branch
          %263 = sbr.rel (%p261) target = $region24
        $region23: #{tpu_custom_call.1} parent=19 // pred_region
          %s264 = sand.u32 %s27, 1
          %s265 = scalar_lea.sflag [#allocation6], %s264
          %s266 = sand.u32 %s58, 1
          %s267 = scalar_lea.vmem [#allocation5], %s266
          %269 = vsyncadd %s265, 0
          %s270 = scalar_lea.hbm %s1, %s27
          %s272 = sshll.u32 %s270, 4
          %s273 = int_to_ptr.hbm [resolvable:$true] %s272
          %s274 = sshll.u32 %s267, 4
          %s275 = int_to_ptr.vmem [resolvable:$true] %s274
          %277 = dma.hbm_to_vmem [thread:$0]  %s273, 16, %s275, %s265
        $region24: #{tpu_custom_call.1} parent=19 // pred_fallthru
          _
        // Predicated region
        $region25: #{tpu_custom_call.1} parent=19 // pred_check
          %p278 = pneg %p94
        $region26: #{tpu_custom_call.1} parent=19 // pred_check_branch
          %280 = sbr.rel (%p278) target = $region28
        $region27: #{tpu_custom_call.1} parent=19 // pred_region
          %s281 = sand.u32 %s27, 1
          %s282 = scalar_lea.sflag [#allocation6], %s281
          %s283 = sand.u32 %s84, 1
          %s284 = smul.addr %s283, 16
          %s285 = scalar_lea.vmem [#allocation7], %s284
          %287 = vsyncadd %s282, 0
          %s288 = smul.addr %s27, 4
          %s289 = smul.addr %s288, 4
          %s290 = scalar_lea.hbm %s2, %s289
          %s291 = sshll.u32 %s290, 4
          %s292 = int_to_ptr.hbm [resolvable:$true] %s291
          %s293 = sshll.u32 %s285, 4
          %s294 = int_to_ptr.vmem [resolvable:$true] %s293
          %299 = dma.hbm_to_vmem [thread:$0]  %s292, 256, %s294, %s282, 128, 128, 8
        $region28: #{tpu_custom_call.1} parent=19 // pred_fallthru
          _
        // Predicated region
        $region29: #{tpu_custom_call.1} parent=19 // pred_check
          %p300 = pneg %p120
        $region30: #{tpu_custom_call.1} parent=19 // pred_check_branch
          %302 = sbr.rel (%p300) target = $region32
        $region31: #{tpu_custom_call.1} parent=19 // pred_region
          %s303 = sand.u32 %s110, 1
          %s304 = scalar_lea.sflag [#allocation9], %s303
          %s305 = sand.u32 %s110, 1
          %s306 = smul.addr %s305, 8
          %s307 = scalar_lea.vmem [#allocation8], %s306
          %309 = vsyncadd %s304, 0
          %s310 = smul.addr %s27, 2
          %s311 = smul.addr %s310, 4
          %s312 = scalar_lea.hbm %s3, %s311
          %s314 = sshll.u32 %s312, 4
          %s315 = int_to_ptr.hbm [resolvable:$true] %s314
          %s316 = sshll.u32 %s307, 4
          %s317 = int_to_ptr.vmem [resolvable:$true] %s316
          %319 = dma.hbm_to_vmem [thread:$0]  %s315, 128, %s317, %s304
        $region32: #{tpu_custom_call.1} parent=19 // pred_fallthru
          _
      $region20: #{tpu_custom_call.1} parent=5 // pred_fallthru
        _
      %p320 = scmp.le.s32.totalorder 1, %s27
      %p321 = scmp.lt.s32.totalorder %s27, 3
      %p322 = pnand %p320, %p321
      %p323 = pneg %p322
      // Predicated region
      $region33: #{tpu_custom_call.1} parent=5 // pred_check
        _
      $region34: #{tpu_custom_call.1} parent=5 // pred_check_branch
        %325 = sbr.rel (%p322) target = $region36
      $region35: #{tpu_custom_call.1} parent=5 // pred_region
        %s326 = ssub.s32 %s27, 1
        // Predicated region
        $region37: #{tpu_custom_call.1} parent=35 // pred_check
          %p327 = pneg %p48
        $region38: #{tpu_custom_call.1} parent=35 // pred_check_branch
          %329 = sbr.rel (%p327) target = $region40
        $region39: #{tpu_custom_call.1} parent=35 // pred_region
          %331 = dma.done [#allocation3], 64
        $region40: #{tpu_custom_call.1} parent=35 // pred_fallthru
          _
        %s332 = sand.u32 %s32, 1
        %s333 = scalar_lea.sflag [#allocation6], %s332
        %s334 = sand.u32 %s61, 1
        %s335 = scalar_lea.vmem [#allocation5], %s334
        // Predicated region
        $region41: #{tpu_custom_call.1} parent=35 // pred_check
          %p336 = pneg %p74
        $region42: #{tpu_custom_call.1} parent=35 // pred_check_branch
          %338 = sbr.rel (%p336) target = $region44
        $region43: #{tpu_custom_call.1} parent=35 // pred_region
          %340 = dma.done %s333, 16
        $region44: #{tpu_custom_call.1} parent=35 // pred_fallthru
          _
        %s341 = sand.u32 %s32, 1
        %s342 = scalar_lea.sflag [#allocation6], %s341
        %s343 = sand.u32 %s87, 1
        %s344 = smul.addr %s343, 16
        %s345 = scalar_lea.vmem [#allocation7], %s344
        // Predicated region
        $region45: #{tpu_custom_call.1} parent=35 // pred_check
          %p346 = pneg %p100
        $region46: #{tpu_custom_call.1} parent=35 // pred_check_branch
          %348 = sbr.rel (%p346) target = $region48
        $region47: #{tpu_custom_call.1} parent=35 // pred_region
          %350 = dma.done %s342, 256
        $region48: #{tpu_custom_call.1} parent=35 // pred_fallthru
          _
        %s351 = sand.u32 %s113, 1
        %s352 = scalar_lea.sflag [#allocation9], %s351
        %s353 = sand.u32 %s113, 1
        %s354 = smul.addr %s353, 8
        %s355 = scalar_lea.vmem [#allocation8], %s354
        // Predicated region
        $region49: #{tpu_custom_call.1} parent=35 // pred_check
          %p356 = pneg %p126
        $region50: #{tpu_custom_call.1} parent=35 // pred_check_branch
          %358 = sbr.rel (%p356) target = $region52
        $region51: #{tpu_custom_call.1} parent=35 // pred_region
          %360 = dma.done %s352, 128
        $region52: #{tpu_custom_call.1} parent=35 // pred_fallthru
          _
        %p361 = pneg %p48
        %p362 = pneg %p45
        %s363 = sand.u32 %s32, 1
        %s364 = scalar_lea.sflag [#allocation6], %s363
        %s365 = sand.u32 %s61, 1
        %s366 = scalar_lea.vmem [#allocation5], %s365
        %p367 = pneg %p74
        %p368 = pneg %p71
        %s369 = sand.u32 %s32, 1
        %s370 = scalar_lea.sflag [#allocation6], %s369
        %s371 = sand.u32 %s87, 1
        %s372 = smul.addr %s371, 16
        %s373 = scalar_lea.vmem [#allocation7], %s372
        %p374 = pneg %p100
        %p375 = pneg %p97
        %s376 = sand.u32 %s113, 1
        %s377 = scalar_lea.sflag [#allocation9], %s376
        %s378 = sand.u32 %s113, 1
        %s379 = smul.addr %s378, 8
        %s380 = scalar_lea.vmem [#allocation8], %s379
        %p381 = pneg %p126
        %p382 = pneg %p123
        %p383 = pneg %p152
        %p384 = pneg %p149
        %s385 = sand.u32 %s139, 1
        %s386 = scalar_lea.sflag [#allocation4], %s385
        %s387 = sand.u32 %s139, 1
        %s388 = smul.addr %s387, 16
        %s389 = scalar_lea.vmem [#allocation10], %s388
        %p390 = pneg %p178
        %p391 = pneg %p175
        %s392 = sand.u32 %s32, 1
        %s393 = scalar_lea.sflag [#allocation12], %s392
        %s394 = sand.u32 %s165, 1
        %s395 = smul.addr %s394, 16
        %s396 = scalar_lea.vmem [#allocation11], %s395
        %p397 = pneg %p204
        %p398 = pneg %p201
        %s399 = sand.u32 %s32, 1
        %s400 = scalar_lea.sflag [#allocation12], %s399
        %s401 = sand.u32 %s191, 1
        %s402 = smul.addr %s401, 16
        %s403 = scalar_lea.vmem [#allocation13], %s402
        %p404 = pneg %p230
        %p405 = pneg %p227
        %p406 = scmp.lt.s32.totalorder %s32, 1
        %s407 = scalar_select %p406, %s32, 1
        %s408 = smul.addr %s407, 2
        %s409 = smul.addr %s408, 8
        %s410 = scalar_lea.vmem %s7, %s409
        %p411 = scmp.lt.s32.totalorder %s32, 1
        %s412 = scalar_select %p411, %s32, 1
        %s413 = smul.addr %s412, 2
        %s414 = smul.addr %s413, 8
        %s415 = scalar_lea.vmem %s7, %s414
        %v417 = vld [vmem:[%s345] sm:$0xff]
        %v418 = vld [vmem:[%s345 + $0x8] sm:$0xff]
        %v419 = vld [vmem:[%s355] sm:$0xff]
        %v420 = vunpack.c.l.bf16 %v417
        %v421 = vunpack.c.h.bf16 %v417
        %v422 = vunpack.c.l.bf16 %v418
        %v423 = vunpack.c.h.bf16 %v418
        %v424 = vld [vmem:[#allocation2] sm:$0xf]
        %v425 = vld [vmem:[%s335] sm:$0x1]
        %v427 = vperm.slane %v424, 0
        %v428 = vperm.slane %v424, 2
        %v431 = vperm.slane %v427, 0
        %v432 = vperm.slane %v428, 0
        %v433 = vmul.f32 %v420, %v431
        %v434 = vmul.f32 %v421, %v432
        %v435 = vmul.f32 %v422, %v431
        %v436 = vmul.f32 %v423, %v432
        %vm437 = vcmask 588800
        %v438 = vsel %vm437, %v434, 0.0
        %v439 = vadd.f32 %v433, %v438
        %440 = vadd.xlane.f32.xlu0 %v439
        %v441 = vpop.xlane.xlu0 %440
        %v442 = vsel %vm437, %v436, 0.0
        %v443 = vadd.f32 %v435, %v442
        %444 = vadd.xlane.f32.xlu0 %v443
        %v445 = vpop.xlane.xlu0 %444
        %v446 = vperm.slane %v424, 1
        %v447 = vperm.slane %v424, 3
        %v450 = vperm.slane %v446, 1
        %v451 = vperm.slane %v447, 1
        %v452 = vmul.f32 %v420, %v450
        %v453 = vmul.f32 %v421, %v451
        %v454 = vmul.f32 %v422, %v450
        %v455 = vmul.f32 %v423, %v451
        %v456 = vpack.c.bf16 %v453, %v452
        %v457 = vpack.c.bf16 %v455, %v454
        %v460 = vunpack.c.l.b16 %v456
        %v461 = vunpack.c.h.b16 %v456
        %v462 = vunpack.c.l.b16 %v457
        %v463 = vunpack.c.h.b16 %v457
        %v464 = vpack.c.b16 %v462, %v460
        %v465 = vpack.c.b16 %v463, %v461
        %v468 = vunpack.c.l.b16 %v419
        %v469 = vunpack.c.h.b16 %v419
        %v470 = vpack.c.b16 %v468, %v468
        %v471 = vpack.c.b16 %v469, %v469
        %v474 = vsel %vm437, %v465, 0
        %v477 = vsel %vm437, %v471, 0
        %479 = vmatpush.bf16.xpose.msra.mxu0 0
        %480 = vmatpush.bf16.xpose.msra.mxu0 0
        %481 = vmatpush.bf16.xpose.msra.mxu0 0
        %482 = vmatpush.bf16.xpose.msra.mxu0 0
        %483 = vmatpush.bf16.xpose.msra.mxu0 0
        %484 = vmatpush.bf16.xpose.msra.mxu0 0
        %485 = vmatpush.bf16.xpose.msra.mxu0 0
        %486 = vmatpush.bf16.xpose.msra.mxu0 %v470
        %487 = vmatmul.bf16.gmra.mxu0 %v464
        %v488 = vpop.f32.mrf.mxu0
        %v489 = vadd.f32 %v441, %v488
        %v490 = vpop.f32.mrf.mxu0
        %v491 = vadd.f32 %v445, %v490
        %492 = vdwg.mxu0
        %493 = vmatpush.bf16.xpose.msra.mxu0 0
        %494 = vmatpush.bf16.xpose.msra.mxu0 0
        %495 = vmatpush.bf16.xpose.msra.mxu0 0
        %496 = vmatpush.bf16.xpose.msra.mxu0 0
        %497 = vmatpush.bf16.xpose.msra.mxu0 0
        %498 = vmatpush.bf16.xpose.msra.mxu0 0
        %499 = vmatpush.bf16.xpose.msra.mxu0 0
        %500 = vmatpush.bf16.xpose.msra.mxu0 %v477
        %501 = vmatmul.bf16.gmra.mxu0 %v474
        %v502 = vpop.f32.mrf.mxu0
        %v503 = vadd.f32 %v489, %v502
        %v504 = vpop.f32.mrf.mxu0
        %v505 = vadd.f32 %v491, %v504
        %506 = vdwg.mxu0
        %v508 = vperm.slane %v425, 0
        %v510 = vadd.f32 %v503, %v508
        %v511 = vadd.f32 %v505, %v508
        %vm512 = vcmask 64512
        %v513 = vsel %vm512, %v510, -inf
        %514 = vmax.xlane.f32.xlu0 %v513
        %v515 = vpop.xlane.xlu0 %514
        %v516 = vsel %vm512, %v511, -inf
        %517 = vmax.xlane.f32.xlu0 %v516
        %v518 = vpop.xlane.xlu0 %517
        %v519 = vsub.f32 %v510, %v515
        %v520 = vsub.f32 %v511, %v518
        %v521 = vmul.f32 %v519, 1.442695
        %v522 = vpow.pop %v521
        %v523 = vmul.f32 %v520, 1.442695
        %v524 = vpow.pop %v523
        %v525 = vsel %vm512, %v522, 0.0
        %526 = vadd.xlane.f32.xlu0 %v525
        %v527 = vpop.xlane.xlu0 %526
        %v528 = vsel %vm512, %v524, 0.0
        %529 = vadd.xlane.f32.xlu0 %v528
        %v530 = vpop.xlane.xlu0 %529
        %v531 = vrcp.pop %v527
        %v532 = vrcp.pop %v530
        %v533 = vmul.f32 %v522, %v531
        %v534 = vmul.f32 %v524, %v532
        %v535 = vpack.c.bf16 %v533, %v533
        %v536 = vpack.c.bf16 %v534, %v534
        %v539 = vunpack.c.l.b16 %v535
        %v540 = vunpack.c.l.b16 %v536
        %v541 = vpack.c.b16 %v540, %v539
        %v543 = vsel %vm512, %v541, 0
        %vm545 = vcmask 1043456
        %v547 = vsel %vm545, %v470, 0
        %v549 = vsel %vm545, %v471, 0
        %551 = vmatpush.bf16.msra.mxu0 0
        %552 = vmatpush.bf16.msra.mxu0 0
        %553 = vmatpush.bf16.msra.mxu0 0
        %554 = vmatpush.bf16.msra.mxu0 0
        %555 = vmatpush.bf16.msra.mxu0 0
        %556 = vmatpush.bf16.msra.mxu0 0
        %557 = vmatpush.bf16.msra.mxu0 0
        %558 = vmatpush.bf16.msra.mxu0 %v547
        %559 = vmatmul.bf16.gmra.mxu0 %v543
        %v560 = vpop.f32.mrf.mxu0
        %v561 = vadd.f32 0.0, %v560
        %v562 = vpop.f32.mrf.mxu0
        %v563 = vadd.f32 0.0, %v562
        %564 = vdwg.mxu0
        %565 = vmatpush.bf16.msra.mxu0 0
        %566 = vmatpush.bf16.msra.mxu0 0
        %567 = vmatpush.bf16.msra.mxu0 0
        %568 = vmatpush.bf16.msra.mxu0 0
        %569 = vmatpush.bf16.msra.mxu0 0
        %570 = vmatpush.bf16.msra.mxu0 0
        %571 = vmatpush.bf16.msra.mxu0 0
        %572 = vmatpush.bf16.msra.mxu0 %v549
        %573 = vmatmul.bf16.gmra.mxu0 %v543
        %v574 = vpop.f32.mrf.mxu0
        %v575 = vadd.f32 0.0, %v574
        %v576 = vpop.f32.mrf.mxu0
        %v577 = vadd.f32 0.0, %v576
        %578 = vdwg.mxu0
        %v579 = vmax.f32 %v515, %v518
        %v580 = vrot.slane %v579, 4
        %v581 = vmax.f32 %v579, %v580
        %v582 = vrot.slane %v581, 2
        %v583 = vmax.f32 %v581, %v582
        %v584 = vrot.slane %v583, 1
        %v585 = vmax.f32 %v583, %v584
        %v586 = vsub.f32 %v515, %v585
        %v587 = vsub.f32 %v518, %v585
        %v588 = vmul.f32 %v586, 1.442695
        %v589 = vpow.pop %v588
        %v590 = vmul.f32 %v587, 1.442695
        %v591 = vpow.pop %v590
        %v592 = vadd.f32 %v589, %v591
        %v593 = vrot.slane %v592, 4
        %v594 = vadd.f32 %v592, %v593
        %v595 = vrot.slane %v594, 2
        %v596 = vadd.f32 %v594, %v595
        %v597 = vrot.slane %v596, 1
        %v598 = vadd.f32 %v596, %v597
        %v599 = vrcp.pop %v598
        %v600 = vmul.f32 %v598, %v599
        %v601 = vsub.f32 1.0, %v600
        %v602 = vmul.f32 %v599, %v601
        %v603 = vadd.f32 %v599, %v602
        %vm604 = vweird.f32 %v598
        %vm605 = vweird.f32 %v599
        %vm606 = vmor %vm604, %vm605
        %v607 = vsel %vm606, %v599, %v603
        %v608 = vand.u32 2147483647, %v598
        %vm609 = vcmp.eq.f32.partialorder %v608, 8.507059e+37
        %v610 = vand.u32 %v598, 2147483648
        %v611 = vor.u32 1.1754944e-38, %v610
        %v612 = vsel %vm609, %v611, %v607
        %v613 = vmul.f32 %v589, %v612
        %v614 = vmul.f32 %v591, %v612
        %v615 = vmul.f32 %v613, %v420
        %v616 = vmul.f32 %v613, %v421
        %v617 = vmul.f32 %v614, %v422
        %v618 = vmul.f32 %v614, %v423
        %v619 = vadd.f32 %v615, %v617
        %v620 = vrot.slane %v619, 4
        %v621 = vadd.f32 %v619, %v620
        %v622 = vrot.slane %v621, 2
        %v623 = vadd.f32 %v621, %v622
        %v624 = vrot.slane %v623, 1
        %v625 = vadd.f32 %v623, %v624
        %v626 = vsel %vm437, %v616, 0.0
        %v627 = vsel %vm437, %v618, 0.0
        %v628 = vadd.f32 %v626, %v627
        %v629 = vrot.slane %v628, 4
        %v630 = vadd.f32 %v628, %v629
        %v631 = vrot.slane %v630, 2
        %v632 = vadd.f32 %v630, %v631
        %v633 = vrot.slane %v632, 1
        %v634 = vadd.f32 %v632, %v633
        %v635 = vmul.f32 %v420, %v561
        %v636 = vmul.f32 %v421, %v575
        %v637 = vmul.f32 %v422, %v563
        %v638 = vmul.f32 %v423, %v577
        %v639 = vmul.f32 %v420, %v625
        %v640 = vmul.f32 %v421, %v634
        %v641 = vmul.f32 %v422, %v625
        %v642 = vmul.f32 %v423, %v634
        %v643 = vpack.c.bf16 %v575, %v561
        %v644 = vpack.c.bf16 %v577, %v563
        %vm645 = vcmask 588804
        %vm646 = vmor %vm645, %vm545
        %647 = vst.msk [vmem:[%s389] sm:$0xff] %vm646, %v643
        %648 = vst.msk [vmem:[%s389 + $0x8] sm:$0xff] %vm646, %v644
        %v649 = vpack.c.bf16 %v636, %v635
        %v650 = vpack.c.bf16 %v638, %v637
        %651 = vst.msk [vmem:[%s396] sm:$0xff] %vm646, %v649
        %652 = vst.msk [vmem:[%s396 + $0x8] sm:$0xff] %vm646, %v650
        %v653 = vpack.c.bf16 %v640, %v639
        %v654 = vpack.c.bf16 %v642, %v641
        %655 = vst.msk [vmem:[%s403] sm:$0xff] %vm646, %v653
        %656 = vst.msk [vmem:[%s403 + $0x8] sm:$0xff] %vm646, %v654
        %vm657 = vcmask 7168
        %658 = vst.msk [vmem:[%s415] sm:$0xff] %vm657, %v613
        %659 = vst.msk [vmem:[%s415 + $0x8] sm:$0xff] %vm657, %v614
        %s660 = sand.u32 %s139, 1
        %s661 = scalar_lea.sflag [#allocation4], %s660
        %s662 = sand.u32 %s139, 1
        %s663 = smul.addr %s662, 16
        %s664 = scalar_lea.vmem [#allocation10], %s663
        %s665 = sand.u32 %s32, 1
        %s666 = scalar_lea.sflag [#allocation12], %s665
        %s667 = sand.u32 %s165, 1
        %s668 = smul.addr %s667, 16
        %s669 = scalar_lea.vmem [#allocation11], %s668
        %s670 = sand.u32 %s32, 1
        %s671 = scalar_lea.sflag [#allocation12], %s670
        %s672 = sand.u32 %s191, 1
        %s673 = smul.addr %s672, 16
        %s674 = scalar_lea.vmem [#allocation13], %s673
        %p675 = scmp.lt.s32.totalorder %s32, 1
        %s676 = scalar_select %p675, %s32, 1
        %s677 = smul.addr %s676, 2
        %s678 = smul.addr %s677, 8
        %s679 = scalar_lea.vmem %s7, %s678
        // Predicated region
        $region53: #{tpu_custom_call.1} parent=35 // pred_check
          %p680 = pneg %p149
        $region54: #{tpu_custom_call.1} parent=35 // pred_check_branch
          %682 = sbr.rel (%p680) target = $region56
        $region55: #{tpu_custom_call.1} parent=35 // pred_region
          %684 = vsyncadd %s661, 0
          %s685 = smul.addr %s32, 4
          %s686 = smul.addr %s685, 4
          %s687 = scalar_lea.hbm %s4, %s686
          %s688 = sshll.u32 %s664, 4
          %s689 = int_to_ptr.vmem [resolvable:$true] %s688
          %s690 = sshll.u32 %s687, 4
          %s691 = int_to_ptr.hbm [resolvable:$true] %s690
          %696 = dma.vmem_to_hbm [thread:$0]  %s689, 256, %s691, %s661, 128, 128, 8
        $region56: #{tpu_custom_call.1} parent=35 // pred_fallthru
          _
        // Predicated region
        $region57: #{tpu_custom_call.1} parent=35 // pred_check
          %p697 = pneg %p175
        $region58: #{tpu_custom_call.1} parent=35 // pred_check_branch
          %699 = sbr.rel (%p697) target = $region60
        $region59: #{tpu_custom_call.1} parent=35 // pred_region
          %701 = vsyncadd %s666, 0
          %s702 = smul.addr %s32, 4
          %s703 = smul.addr %s702, 4
          %s704 = scalar_lea.hbm %s5, %s703
          %s705 = sshll.u32 %s669, 4
          %s706 = int_to_ptr.vmem [resolvable:$true] %s705
          %s707 = sshll.u32 %s704, 4
          %s708 = int_to_ptr.hbm [resolvable:$true] %s707
          %713 = dma.vmem_to_hbm [thread:$0]  %s706, 256, %s708, %s666, 128, 128, 8
        $region60: #{tpu_custom_call.1} parent=35 // pred_fallthru
          _
        // Predicated region
        $region61: #{tpu_custom_call.1} parent=35 // pred_check
          %p714 = pneg %p201
        $region62: #{tpu_custom_call.1} parent=35 // pred_check_branch
          %716 = sbr.rel (%p714) target = $region64
        $region63: #{tpu_custom_call.1} parent=35 // pred_region
          %718 = vsyncadd %s671, 0
          %s719 = smul.addr %s32, 4
          %s720 = smul.addr %s719, 4
          %s721 = scalar_lea.hbm %s6, %s720
          %s722 = sshll.u32 %s674, 4
          %s723 = int_to_ptr.vmem [resolvable:$true] %s722
          %s724 = sshll.u32 %s721, 4
          %s725 = int_to_ptr.hbm [resolvable:$true] %s724
          %730 = dma.vmem_to_hbm [thread:$0]  %s723, 256, %s725, %s671, 128, 128, 8
        $region64: #{tpu_custom_call.1} parent=35 // pred_fallthru
          _
        // Predicated region
        $region65: #{tpu_custom_call.1} parent=35 // pred_check
          %p731 = pneg %p227
        $region66: #{tpu_custom_call.1} parent=35 // pred_check_branch
          %733 = sbr.rel (%p731) target = $region68
        $region67: #{tpu_custom_call.1} parent=35 // pred_region
          _
        $region68: #{tpu_custom_call.1} parent=35 // pred_fallthru
          _
      $region36: #{tpu_custom_call.1} parent=5 // pred_fallthru
        _
      %p734 = scmp.le.s32.totalorder 2, %s27
      // Predicated region
      $region69: #{tpu_custom_call.1} parent=5 // pred_check
        %p735 = pneg %p734
      $region70: #{tpu_custom_call.1} parent=5 // pred_check_branch
        %737 = sbr.rel (%p735) target = $region72
      $region71: #{tpu_custom_call.1} parent=5 // pred_region
        %s738 = ssub.s32 %s27, 2
        // Predicated region
        $region73: #{tpu_custom_call.1} parent=71 // pred_check
          %p739 = pneg %p155
        $region74: #{tpu_custom_call.1} parent=71 // pred_check_branch
          %741 = sbr.rel (%p739) target = $region76
        $region75: #{tpu_custom_call.1} parent=71 // pred_region
          %s742 = sand.u32 %s140, 1
          %s743 = scalar_lea.sflag [#allocation4], %s742
          %s744 = sand.u32 %s140, 1
          %s745 = smul.addr %s744, 16
          %s746 = scalar_lea.vmem [#allocation10], %s745
          %748 = dma.done %s743, 256
        $region76: #{tpu_custom_call.1} parent=71 // pred_fallthru
          _
        // Predicated region
        $region77: #{tpu_custom_call.1} parent=71 // pred_check
          %p749 = pneg %p181
        $region78: #{tpu_custom_call.1} parent=71 // pred_check_branch
          %751 = sbr.rel (%p749) target = $region80
        $region79: #{tpu_custom_call.1} parent=71 // pred_region
          %s752 = sand.u32 %s33, 1
          %s753 = scalar_lea.sflag [#allocation12], %s752
          %s754 = sand.u32 %s166, 1
          %s755 = smul.addr %s754, 16
          %s756 = scalar_lea.vmem [#allocation11], %s755
          %758 = dma.done %s753, 256
        $region80: #{tpu_custom_call.1} parent=71 // pred_fallthru
          _
        // Predicated region
        $region81: #{tpu_custom_call.1} parent=71 // pred_check
          %p759 = pneg %p207
        $region82: #{tpu_custom_call.1} parent=71 // pred_check_branch
          %761 = sbr.rel (%p759) target = $region84
        $region83: #{tpu_custom_call.1} parent=71 // pred_region
          %s762 = sand.u32 %s33, 1
          %s763 = scalar_lea.sflag [#allocation12], %s762
          %s764 = sand.u32 %s192, 1
          %s765 = smul.addr %s764, 16
          %s766 = scalar_lea.vmem [#allocation13], %s765
          %768 = dma.done %s763, 256
        $region84: #{tpu_custom_call.1} parent=71 // pred_fallthru
          _
        // Predicated region
        $region85: #{tpu_custom_call.1} parent=71 // pred_check
          %p769 = pneg %p233
        $region86: #{tpu_custom_call.1} parent=71 // pred_check_branch
          %771 = sbr.rel (%p769) target = $region88
        $region87: #{tpu_custom_call.1} parent=71 // pred_region
          %p772 = scmp.lt.s32.totalorder %s33, 1
          %s773 = scalar_select %p772, %s33, 1
          %s774 = smul.addr %s773, 2
          %s775 = smul.addr %s774, 8
          %s776 = scalar_lea.vmem %s7, %s775
        $region88: #{tpu_custom_call.1} parent=71 // pred_fallthru
          _
      $region72: #{tpu_custom_call.1} parent=5 // pred_fallthru
        _
    $region6: #{tpu_custom_call.1} parent=1 // loop_footer
      %s31 = sadd.s32 1, %s27
    $region7: #{tpu_custom_call.1} parent=1 // loop_footer_branch
      %26 = sbr.rel target = $region3
    $region8: #{tpu_custom_call.1} parent=1 // loop_exit
      _
    %777 = vsyncpa [#allocation3], 1
    %s778 = scalar_lea.sflag [#allocation3], 1
    %779 = vsyncpa %s778, 1
    %780 = vsyncpa [#allocation6], 1
    %s781 = scalar_lea.sflag [#allocation6], 1
    %782 = vsyncpa %s781, 1
    %783 = vsyncpa [#allocation9], 1
    %s784 = scalar_lea.sflag [#allocation9], 1
    %785 = vsyncpa %s784, 1
    %786 = vsyncpa [#allocation4], 1
    %s787 = scalar_lea.sflag [#allocation4], 1
    %788 = vsyncpa %s787, 1
    %789 = vsyncpa [#allocation12], 1
    %s790 = scalar_lea.sflag [#allocation12], 1
    %791 = vsyncpa %s790, 1

</llo_original>
